<compile_context>
chip_gen: v5e
topology: v5e:2x2
jax: 0.10.0
libtpu: 0.0.40
codegen_flags: <defaults>
</compile_context>

<pallas_src>
import functools

import jax
import jax.numpy as jnp
import numpy as np
from jax.experimental import pallas as pl
from jax.experimental.pallas import tpu as pltpu


# ----------------------------------------------------------------------------
# Fused encoder kernel (one image per grid step)
# ----------------------------------------------------------------------------
def _fused_encoder_kernel(
    x_ref,
    u1_ref, m1_ref, b1_ref, rl1_ref, v1_ref, s1_ref, t1_ref,
    u2_ref, m2_ref, b2_ref, rl2_ref, v2_ref, s2_ref, t2_ref,
    *rest,
    mode,
):
    """Fused: conv1+ReLU -> maxpool -> conv2+ReLU -> maxpool -> mean pools
    (-> classifier heads in 'class' mode).  Everything stays in VMEM/vregs.

    Activation layout per image: 2-D [h, w*channels] (lane dim 64 or 128).
      * 3x3 'same' conv  = sum over kernel-row kh of (U[kh] @ x) @ M[kh] + b,
        where U[kh] is a row-shift (zero-padded) matrix and M[kh] a banded
        weight matrix built on the host from the OIHW conv weight.
      * 2x2/stride-2 maxpool = pairwise max with lane/row-shift matmuls (RL,
        V) followed by even-row / even-w selection matmuls (S, T).
      * mean pools / linear heads are folded into [lanes, out] matrices (G*).
    """

    def mm(a, b):
        return jnp.dot(a, b, preferred_element_type=jnp.float32)

    x = x_ref[0].astype(jnp.float32)                      # [H, W*Cin] = [16, 64]

    # ---- conv1 (3x3, pad 1) + bias + ReLU -> [16, 128] ----------------------
    acc = b1_ref[...]                                     # [1, 128] broadcasts
    for kh in range(3):
        xs = mm(u1_ref[kh], x)                            # row shift, zero pad
        m = m1_ref[kh]                                    # banded weights (bf16)
        acc = acc + mm(xs.astype(m.dtype), m)
    h1 = jnp.maximum(acc, 0.0)                            # [16, 128]

    # ---- 2x2 maxpool (stride 2) -> [8, 64] ----------------------------------
    a = jnp.maximum(h1, mm(h1, rl1_ref[...]))             # pair-max along w
    a = jnp.maximum(a, mm(v1_ref[...], a))                # pair-max along h
    p1 = mm(mm(s1_ref[...], a), t1_ref[...])              # keep even h / even w

    # ---- conv2 (3x3, pad 1) + bias + ReLU -> [8, 128] -----------------------
    acc = b2_ref[...]
    for kh in range(3):
        xs = mm(u2_ref[kh], p1)
        m = m2_ref[kh]
        acc = acc + mm(xs.astype(m.dtype), m)
    h2 = jnp.maximum(acc, 0.0)                            # [8, 128]

    # ---- 2x2 maxpool -> [4, 64] ---------------------------------------------
    a = jnp.maximum(h2, mm(h2, rl2_ref[...]))
    a = jnp.maximum(a, mm(v2_ref[...], a))
    p2 = mm(mm(s2_ref[...], a), t2_ref[...])              # [4, 64]

    if mode == "class":
        # classifier heads fused in: logits = mean_pool(feat) @ W.T + b, with
        # the spatial mean folded into the [64, n_classes] matrices.
        gw_main_ref, gw_side_ref, bhx_ref, bhs_ref, ox_ref, os_ref = rest
        main = jnp.sum(mm(p2, gw_main_ref[...]), axis=0, keepdims=True) + bhx_ref[...]
        side = jnp.sum(mm(p1, gw_side_ref[...]), axis=0, keepdims=True) + bhs_ref[...]
        ox_ref[0] = main.astype(ox_ref.dtype)             # [1, NC]
        os_ref[0] = side.astype(os_ref.dtype)             # [1, NC]
    elif mode == "feat":
        g2_ref, feat_ref = rest
        feat = jnp.sum(mm(p2, g2_ref[...]), axis=0, keepdims=True)     # [1, C2]
        feat_ref[0] = feat.astype(feat_ref.dtype)
    else:  # "feat_side"
        g2_ref, feat_ref, p1_ref = rest
        feat = jnp.sum(mm(p2, g2_ref[...]), axis=0, keepdims=True)
        feat_ref[0] = feat.astype(feat_ref.dtype)
        p1_ref[0] = p1.astype(p1_ref.dtype)               # block1 map [H1, W1*C1]


# ----------------------------------------------------------------------------
# Host-side (one-time) constant construction
# ----------------------------------------------------------------------------
def _make_band_matrices(w_oihw, width):
    """Conv weight [Cout, Cin, 3, 3] -> 3 banded matrices [width*Cin, width*Cout]
    (one per kernel row) for the [h, w*channels] layout."""
    co_n, ci_n, kh_n, kw_n = w_oihw.shape
    out = np.zeros((kh_n, width * ci_n, width * co_n), np.float32)
    for kh in range(kh_n):
        for w in range(width):
            for kw in range(kw_n):
                win = w + kw - 1
                if 0 <= win < width:
                    out[kh,
                        win * ci_n:(win + 1) * ci_n,
                        w * co_n:(w + 1) * co_n] = w_oihw[:, :, kh, kw].T
    return out


def _make_row_shift(h):
    """U[kh] @ X selects input row (h + kh - 1), zero at the borders."""
    u = np.zeros((3, h, h), np.float32)
    for kh in range(3):
        for r in range(h):
            rin = r + kh - 1
            if 0 <= rin < h:
                u[kh, r, rin] = 1.0
    return u


def _make_pool_matrices(h_in, w_in, c):
    """Constants for a 2x2/stride-2 maxpool on the [h, w*c] layout."""
    lane = w_in * c
    rl = np.zeros((lane, lane), np.float32)        # x @ rl == shift lanes left by c
    for j in range(lane - c):
        rl[j + c, j] = 1.0
    v = np.zeros((h_in, h_in), np.float32)         # v @ x == shift rows up by 1
    for r in range(h_in - 1):
        v[r, r + 1] = 1.0
    s = np.zeros((h_in // 2, h_in), np.float32)    # s @ x == keep even rows
    for i in range(h_in // 2):
        s[i, 2 * i] = 1.0
    t = np.zeros((lane, (w_in // 2) * c), np.float32)  # x @ t == keep even w
    for wo in range(w_in // 2):
        for cc in range(c):
            t[2 * wo * c + cc, wo * c + cc] = 1.0
    return rl, v, s, t


def _make_group_mean(w_in, c, n_positions):
    """[w_in*c, c] matrix that sums the w channel groups and divides by n_positions."""
    g = np.zeros((w_in * c, c), np.float32)
    for w in range(w_in):
        for cc in range(c):
            g[w * c + cc, cc] = 1.0 / float(n_positions)
    return g


def _const_spec(arr):
    """Full-array block that is identical for every grid step."""
    zeros = (0,) * arr.ndim
    return pl.BlockSpec(arr.shape, lambda n, _z=zeros: _z)


def _sqr_logits(x_shot, x_query, temp):
    """x_shot [B, way, shot, D], x_query [B, Q, D] -> [B, Q, way].
    logits = -||q - proto||^2 * temp (proto = mean over shots).
    Tiny (<1 KFLOP): computed in plain jnp per the performance review - a
    dedicated pallas_call here is pure launch/DMA overhead."""
    proto = jnp.mean(x_shot, axis=2)                              # [B, way, D]
    qq = jnp.sum(x_query * x_query, axis=-1, keepdims=True)       # [B, Q, 1]
    pp = jnp.sum(proto * proto, axis=-1)[:, None, :]              # [B, 1, way]
    qp = jnp.einsum("bqd,bwd->bqw", x_query, proto)               # [B, Q, way]
    return -(qq - 2.0 * qp + pp) * temp


# ----------------------------------------------------------------------------
# The Classifier (synthetic encoder + linear classifier + sideout + meta)
# ----------------------------------------------------------------------------
class PallasClassifier:
    def __init__(self, in_channels=4, c1=8, c2=16, n_classes=5,
                 method="sqr", temp=1.0, seed=0, mxu_dtype=jnp.bfloat16,
                 h=16, w=16):
        # Two 2x2 maxpools (PyTorch MaxPool2d floors odd sizes; here we require even).
        assert h % 4 == 0 and w % 4 == 0
        key = jax.random.PRNGKey(seed)
        k1, k2, k3, k4 = jax.random.split(key, 4)
        self.Cin, self.C1, self.C2, self.NC = in_channels, c1, c2, n_classes
        self.H, self.W = h, w
        self.H1, self.W1 = h // 2, w // 2
        self.H2, self.W2 = h // 4, w // 4
        self.method = method
        self.temp = jnp.asarray(temp, jnp.float32)   # temp_learnable=True -> parameter value
        self.training = True
        self.sideout_info = [("block1", c1)]
        self.encoder_out_dim = c2

        # --- raw (PyTorch-shaped) parameters -------------------------------
        w1 = np.asarray(jax.random.normal(k1, (c1, in_channels, 3, 3), jnp.float32)) / (3.0 * in_channels ** 0.5)
        w2 = np.asarray(jax.random.normal(k2, (c2, c1, 3, 3), jnp.float32)) / (3.0 * c1 ** 0.5)
        b1 = np.zeros((c1,), np.float32)
        b2 = np.zeros((c2,), np.float32)
        cls_w = np.asarray(jax.random.normal(k3, (n_classes, c2), jnp.float32)) / (c2 ** 0.5)
        cls_b = np.zeros((n_classes,), np.float32)
        side_w = np.asarray(jax.random.normal(k4, (n_classes, c1), jnp.float32)) / (c1 ** 0.5)
        side_b = np.zeros((n_classes,), np.float32)

        # --- fused-kernel constants (one-time host precompute) --------------
        f32 = jnp.float32
        self.M1 = jnp.asarray(_make_band_matrices(w1, self.W), mxu_dtype)   # [3, W*Cin,  W*C1]
        self.M2 = jnp.asarray(_make_band_matrices(w2, self.W1), mxu_dtype)  # [3, W1*C1, W1*C2]
        self.U1 = jnp.asarray(_make_row_shift(self.H), f32)                 # [3, H, H]
        self.U2 = jnp.asarray(_make_row_shift(self.H1), f32)                # [3, H1, H1]
        self.B1 = jnp.asarray(np.tile(b1, self.W)[None, :], f32)            # [1, W*C1]
        self.B2 = jnp.asarray(np.tile(b2, self.W1)[None, :], f32)           # [1, W1*C2]
        rl1, v1, s1, t1 = _make_pool_matrices(self.H, self.W, c1)
        rl2, v2, s2, t2 = _make_pool_matrices(self.H1, self.W1, c2)
        self.RL1, self.V1, self.S1, self.T1 = (jnp.asarray(a, f32) for a in (rl1, v1, s1, t1))
        self.RL2, self.V2, self.S2, self.T2 = (jnp.asarray(a, f32) for a in (rl2, v2, s2, t2))
        g2 = _make_group_mean(self.W2, c2, self.W2 * self.H2)               # [W2*C2, C2] (1/16)
        g1 = _make_group_mean(self.W1, c1, self.W1 * self.H1)               # [W1*C1, C1] (1/64)
        self.G2 = jnp.asarray(g2, f32)
        # classifier heads folded with the spatial mean pool
        self.GW_main = jnp.asarray(g2 @ cls_w.T, f32)                       # [W2*C2, NC]
        self.GW_side = jnp.asarray(g1 @ side_w.T, f32)                      # [W1*C1, NC]
        self.BHx = jnp.asarray(cls_b[None, :], f32)                         # [1, NC]
        self.BHs = jnp.asarray(side_b[None, :], f32)                        # [1, NC]

        self._call_cache = {}

    # --- fused encoder -------------------------------------------------------
    def _common_inputs(self):
        return [self.U1, self.M1, self.B1, self.RL1, self.V1, self.S1, self.T1,
                self.U2, self.M2, self.B2, self.RL2, self.V2, self.S2, self.T2]

    def _build_encoder_call(self, n, mode):
        key = (n, mode)
        if key in self._call_cache:
            return self._call_cache[key]
        consts = self._common_inputs()
        lane_in = self.W * self.Cin
        in_specs = [pl.BlockSpec((1, self.H, lane_in), lambda i: (i, 0, 0))]
        in_specs += [_const_spec(a) for a in consts]
        if mode == "class":
            extras = [self.GW_main, self.GW_side, self.BHx, self.BHs]
            out_shape = (jax.ShapeDtypeStruct((n, 1, self.NC), jnp.float32),
                         jax.ShapeDtypeStruct((n, 1, self.NC), jnp.float32))
            out_specs = (pl.BlockSpec((1, 1, self.NC), lambda i: (i, 0, 0)),
                         pl.BlockSpec((1, 1, self.NC), lambda i: (i, 0, 0)))
        elif mode == "feat":
            extras = [self.G2]
            out_shape = jax.ShapeDtypeStruct((n, 1, self.C2), jnp.float32)
            out_specs = pl.BlockSpec((1, 1, self.C2), lambda i: (i, 0, 0))
        else:  # "feat_side"
            extras = [self.G2]
            lane_s = self.W1 * self.C1
            out_shape = (jax.ShapeDtypeStruct((n, 1, self.C2), jnp.float32),
                         jax.ShapeDtypeStruct((n, self.H1, lane_s), jnp.float32))
            out_specs = (pl.BlockSpec((1, 1, self.C2), lambda i: (i, 0, 0)),
                         pl.BlockSpec((1, self.H1, lane_s), lambda i: (i, 0, 0)))
        in_specs += [_const_spec(a) for a in extras]
        call = pl.pallas_call(
            functools.partial(_fused_encoder_kernel, mode=mode),
            out_shape=out_shape,
            grid=(n,),
            in_specs=in_specs,
            out_specs=out_specs,
            compiler_params=pltpu.CompilerParams(dimension_semantics=("parallel",)),
        )
        entry = (call, consts + extras)
        self._call_cache[key] = entry
        return entry

    def _encode(self, x_nchw, mode):
        n = x_nchw.shape[0]
        # NCHW -> NHWC -> [N, H, W*Cin] (layout plumbing so channels ride the lane dim)
        x3 = jnp.transpose(x_nchw.astype(jnp.float32), (0, 2, 3, 1))
        x3 = x3.reshape(n, self.H, self.W * self.Cin)
        call, params = self._build_encoder_call(n, mode)
        return call(x3, *params)

    # --- forward modes -------------------------------------------------------
    def _class_forward(self, x, branch):
        # TODO(synk): encoder 'branch' selection has no synthetic equivalent
        # (single-path encoder); the argument is accepted and ignored.
        del branch
        ox, osd = self._encode(x, "class")
        return ox[:, 0, :], {"block1": osd[:, 0, :]}

    def _meta_forward(self, x_shot, x_query, branch):
        del branch
        shot_shape = x_shot.shape[:-3]
        query_shape = x_query.shape[:-3]
        img_shape = x_shot.shape[-3:]
        xs = x_shot.reshape((-1,) + img_shape)
        xq = x_query.reshape((-1,) + img_shape)
        feats = self._encode(jnp.concatenate([xs, xq], axis=0), "feat")[:, 0, :]
        fs, fq = feats[:xs.shape[0]], feats[xs.shape[0]:]
        way, shot = shot_shape[-2], shot_shape[-1]
        d = fs.shape[-1]
        fs = fs.reshape(-1, way, shot, d)
        fq = fq.reshape(-1, query_shape[-1], d)
        if self.method == "sqr":
            logits = _sqr_logits(fs, fq, self.temp / 1600.0)
        else:
            # TODO(synk): method='cos' path not exercised (module default is 'sqr').
            raise NotImplementedError(self.method)
        return logits.reshape(query_shape + (way,))

    def _meta_test_forward(self, x_shot, x_query, branch, sideout=False):
        del branch
        shot_shape = x_shot.shape[:-3]
        query_shape = x_query.shape[:-3]
        img_shape = x_shot.shape[-3:]
        xs = x_shot.reshape((-1,) + img_shape)
        xq = x_query.reshape((-1,) + img_shape)
        ns, nq = xs.shape[0], xq.shape[0]
        xcat = jnp.concatenate([xs, xq], axis=0)
        if sideout:
            feats3, p1flat = self._encode(xcat, "feat_side")
            feats = feats3[:, 0, :]
            # [Ntot, H1, W1*C1] -> [Ntot, H1, W1, C1] -> NCHW (PyTorch sideout layout)
            p1 = jnp.transpose(p1flat.reshape(-1, self.H1, self.W1, self.C1), (0, 3, 1, 2))
            fs, fq = feats[:ns], feats[-nq:]
            feat_shape = fs.shape[1:]
            fs = fs.reshape(shot_shape + feat_shape)
            fq = fq.reshape(query_shape + feat_shape)
            s_tot = {"block1": p1}
            s_shot = {k: v[:ns].reshape(shot_shape + v.shape[1:]) for k, v in s_tot.items()}
            s_query = {k: v[-nq:].reshape(query_shape + v.shape[1:]) for k, v in s_tot.items()}
            return fq, fs, s_query, s_shot
        feats = self._encode(xcat, "feat")[:, 0, :]
        fs, fq = feats[:ns], feats[-nq:]
        feat_shape = fs.shape[1:]
        return fq.reshape(query_shape + feat_shape), fs.reshape(shot_shape + feat_shape)

    def forward(self, mode, x=None, x_shot=None, x_query=None, branch=-1, sideout=False):
        if self.training:
            if mode == "class":
                return self._class_forward(x, branch=1)
            if mode == "meta":
                return self._meta_forward(x_shot, x_query, branch=2)
            raise ValueError(mode)
        if mode == "class":
            return self._class_forward(x, branch=branch)
        if mode == "meta":
            return self._meta_forward(x_shot, x_query, branch=branch)
        if mode == "meta_test":
            return self._meta_test_forward(x_shot, x_query, branch=branch, sideout=sideout)
        raise ValueError(mode)


# ----------------------------------------------------------------------------
if __name__ == "__main__":
    key = jax.random.PRNGKey(0)
    kx, ks, kq = jax.random.split(key, 3)

    model = PallasClassifier(in_channels=4, c1=8, c2=16, n_classes=5,
                             method="sqr", temp=1.0, seed=0)

    # 'class' mode: x is a plain NCHW batch.
    x = jax.random.normal(kx, (2, 4, 16, 16), jnp.float32)
    out_x, out_s = model.forward("class", x=x)

    # 'meta' mode: x_shot [ep, way, shot, C, H, W], x_query [ep, n_query, C, H, W].
    x_shot = jax.random.normal(ks, (1, 3, 2, 4, 16, 16), jnp.float32)
    x_query = jax.random.normal(kq, (1, 6, 4, 16, 16), jnp.float32)
    logits = model.forward("meta", x_shot=x_shot, x_query=x_query)

    # 'meta_test' mode (eval path), without and with sideout.
    model.training = False
    fq, fs = model.forward("meta_test", x_shot=x_shot, x_query=x_query, branch=-1)
    fq2, fs2, s_query, s_shot = model.forward("meta_test", x_shot=x_shot, x_query=x_query,
                                              branch=-1, sideout=True)

    jax.block_until_ready((out_x, out_s["block1"], logits, fq, fs,
                           fq2, fs2, s_query["block1"], s_shot["block1"]))
    assert out_x.shape == (2, 5)
    assert out_s["block1"].shape == (2, 5)
    assert logits.shape == (1, 6, 3)
    assert fq.shape == (1, 6, 16) and fs.shape == (1, 3, 2, 16)
    assert s_query["block1"].shape == (1, 6, 8, 8, 8)
    assert s_shot["block1"].shape == (1, 3, 2, 8, 8, 8)
    print("KERNEL_OK")
</pallas_src>

<mosaic_0001>
module attributes {stable_mosaic.version = 11 : i64} {
  func.func @_fused_encoder_kernel(%arg0: i32, %arg1: memref<1x16x64xf32, #tpu.memory_space<vmem>>, %arg2: memref<3x16x16xf32, #tpu.memory_space<vmem>>, %arg3: memref<3x64x128xbf16, #tpu.memory_space<vmem>>, %arg4: memref<1x128xf32, #tpu.memory_space<vmem>>, %arg5: memref<128x128xf32, #tpu.memory_space<vmem>>, %arg6: memref<16x16xf32, #tpu.memory_space<vmem>>, %arg7: memref<8x16xf32, #tpu.memory_space<vmem>>, %arg8: memref<128x64xf32, #tpu.memory_space<vmem>>, %arg9: memref<3x8x8xf32, #tpu.memory_space<vmem>>, %arg10: memref<3x64x128xbf16, #tpu.memory_space<vmem>>, %arg11: memref<1x128xf32, #tpu.memory_space<vmem>>, %arg12: memref<128x128xf32, #tpu.memory_space<vmem>>, %arg13: memref<8x8xf32, #tpu.memory_space<vmem>>, %arg14: memref<4x8xf32, #tpu.memory_space<vmem>>, %arg15: memref<128x64xf32, #tpu.memory_space<vmem>>, %arg16: memref<64x5xf32, #tpu.memory_space<vmem>>, %arg17: memref<64x5xf32, #tpu.memory_space<vmem>>, %arg18: memref<1x5xf32, #tpu.memory_space<vmem>>, %arg19: memref<1x5xf32, #tpu.memory_space<vmem>>, %arg20: memref<1x1x5xf32, #tpu.memory_space<vmem>>, %arg21: memref<1x1x5xf32, #tpu.memory_space<vmem>>) attributes {dimension_semantics = [#tpu.dimension_semantics<parallel>], iteration_bounds = array<i64: 2>, scalar_prefetch = 0 : i64, scratch_operands = 0 : i64, tpu.core_type = #tpu.core_type<tc>, window_params = [{transform_indices = @transform_0, window_bounds = array<i64: 1, 16, 64>}, {pipeline_mode = #tpu.pipeline_mode<synchronous>, transform_indices = @transform_1, window_bounds = array<i64: 3, 16, 16>}, {pipeline_mode = #tpu.pipeline_mode<synchronous>, transform_indices = @transform_2, window_bounds = array<i64: 3, 64, 128>}, {pipeline_mode = #tpu.pipeline_mode<synchronous>, transform_indices = @transform_3, window_bounds = array<i64: 1, 128>}, {pipeline_mode = #tpu.pipeline_mode<synchronous>, transform_indices = @transform_4, window_bounds = array<i64: 128, 128>}, {pipeline_mode = #tpu.pipeline_mode<synchronous>, transform_indices = @transform_5, window_bounds = array<i64: 16, 16>}, {pipeline_mode = #tpu.pipeline_mode<synchronous>, transform_indices = @transform_6, window_bounds = array<i64: 8, 16>}, {pipeline_mode = #tpu.pipeline_mode<synchronous>, transform_indices = @transform_7, window_bounds = array<i64: 128, 64>}, {pipeline_mode = #tpu.pipeline_mode<synchronous>, transform_indices = @transform_8, window_bounds = array<i64: 3, 8, 8>}, {pipeline_mode = #tpu.pipeline_mode<synchronous>, transform_indices = @transform_9, window_bounds = array<i64: 3, 64, 128>}, {pipeline_mode = #tpu.pipeline_mode<synchronous>, transform_indices = @transform_10, window_bounds = array<i64: 1, 128>}, {pipeline_mode = #tpu.pipeline_mode<synchronous>, transform_indices = @transform_11, window_bounds = array<i64: 128, 128>}, {pipeline_mode = #tpu.pipeline_mode<synchronous>, transform_indices = @transform_12, window_bounds = array<i64: 8, 8>}, {pipeline_mode = #tpu.pipeline_mode<synchronous>, transform_indices = @transform_13, window_bounds = array<i64: 4, 8>}, {pipeline_mode = #tpu.pipeline_mode<synchronous>, transform_indices = @transform_14, window_bounds = array<i64: 128, 64>}, {pipeline_mode = #tpu.pipeline_mode<synchronous>, transform_indices = @transform_15, window_bounds = array<i64: 64, 5>}, {pipeline_mode = #tpu.pipeline_mode<synchronous>, transform_indices = @transform_16, window_bounds = array<i64: 64, 5>}, {pipeline_mode = #tpu.pipeline_mode<synchronous>, transform_indices = @transform_17, window_bounds = array<i64: 1, 5>}, {pipeline_mode = #tpu.pipeline_mode<synchronous>, transform_indices = @transform_18, window_bounds = array<i64: 1, 5>}, {transform_indices = @transform_19, window_bounds = array<i64: 1, 1, 5>}, {transform_indices = @transform_20, window_bounds = array<i64: 1, 1, 5>}]} {
    %c0 = arith.constant 0 : index
    %c0_0 = arith.constant 0 : index
    %c0_1 = arith.constant 0 : index
    %0 = vector.load %arg1[%c0, %c0_0, %c0_1] : memref<1x16x64xf32, #tpu.memory_space<vmem>>, vector<1x16x64xf32>
    %1 = vector.shape_cast %0 : vector<1x16x64xf32> to vector<16x64xf32>
    %c0_2 = arith.constant 0 : index
    %c0_3 = arith.constant 0 : index
    %2 = vector.load %arg4[%c0_2, %c0_3] : memref<1x128xf32, #tpu.memory_space<vmem>>, vector<1x128xf32>
    %c0_4 = arith.constant 0 : index
    %c0_5 = arith.constant 0 : index
    %c0_6 = arith.constant 0 : index
    %3 = vector.load %arg2[%c0_4, %c0_5, %c0_6] : memref<3x16x16xf32, #tpu.memory_space<vmem>>, vector<1x16x16xf32>
    %4 = vector.shape_cast %3 : vector<1x16x16xf32> to vector<16x16xf32>
    %cst = arith.constant dense<0.000000e+00> : vector<16x64xf32>
    %5 = tpu.matmul %4, %1, %cst {dimension_numbers = #tpu.dot_dimension_numbers<[1], [0], [0], [1], [0, 0, 1, 1], [], []>} : vector<16x16xf32>, vector<16x64xf32>, vector<16x64xf32> -> vector<16x64xf32>
    %c0_7 = arith.constant 0 : index
    %c0_8 = arith.constant 0 : index
    %c0_9 = arith.constant 0 : index
    %6 = vector.load %arg3[%c0_7, %c0_8, %c0_9] : memref<3x64x128xbf16, #tpu.memory_space<vmem>>, vector<1x64x128xbf16>
    %7 = vector.shape_cast %6 : vector<1x64x128xbf16> to vector<64x128xbf16>
    %8 = arith.truncf %5 : vector<16x64xf32> to vector<16x64xbf16>
    %cst_10 = arith.constant dense<0.000000e+00> : vector<16x128xf32>
    %9 = tpu.matmul %8, %7, %cst_10 {dimension_numbers = #tpu.dot_dimension_numbers<[1], [0], [0], [1], [0, 0, 1, 1], [], []>} : vector<16x64xbf16>, vector<64x128xbf16>, vector<16x128xf32> -> vector<16x128xf32>
    %10 = vector.broadcast %2 : vector<1x128xf32> to vector<16x128xf32>
    %11 = arith.addf %10, %9 : vector<16x128xf32>
    %c1 = arith.constant 1 : index
    %c0_11 = arith.constant 0 : index
    %c0_12 = arith.constant 0 : index
    %12 = vector.load %arg2[%c1, %c0_11, %c0_12] : memref<3x16x16xf32, #tpu.memory_space<vmem>>, vector<1x16x16xf32>
    %13 = vector.shape_cast %12 : vector<1x16x16xf32> to vector<16x16xf32>
    %cst_13 = arith.constant dense<0.000000e+00> : vector<16x64xf32>
    %14 = tpu.matmul %13, %1, %cst_13 {dimension_numbers = #tpu.dot_dimension_numbers<[1], [0], [0], [1], [0, 0, 1, 1], [], []>} : vector<16x16xf32>, vector<16x64xf32>, vector<16x64xf32> -> vector<16x64xf32>
    %c1_14 = arith.constant 1 : index
    %c0_15 = arith.constant 0 : index
    %c0_16 = arith.constant 0 : index
    %15 = vector.load %arg3[%c1_14, %c0_15, %c0_16] : memref<3x64x128xbf16, #tpu.memory_space<vmem>>, vector<1x64x128xbf16>
    %16 = vector.shape_cast %15 : vector<1x64x128xbf16> to vector<64x128xbf16>
    %17 = arith.truncf %14 : vector<16x64xf32> to vector<16x64xbf16>
    %cst_17 = arith.constant dense<0.000000e+00> : vector<16x128xf32>
    %18 = tpu.matmul %17, %16, %cst_17 {dimension_numbers = #tpu.dot_dimension_numbers<[1], [0], [0], [1], [0, 0, 1, 1], [], []>} : vector<16x64xbf16>, vector<64x128xbf16>, vector<16x128xf32> -> vector<16x128xf32>
    %19 = arith.addf %11, %18 : vector<16x128xf32>
    %c2 = arith.constant 2 : index
    %c0_18 = arith.constant 0 : index
    %c0_19 = arith.constant 0 : index
    %20 = vector.load %arg2[%c2, %c0_18, %c0_19] : memref<3x16x16xf32, #tpu.memory_space<vmem>>, vector<1x16x16xf32>
    %21 = vector.shape_cast %20 : vector<1x16x16xf32> to vector<16x16xf32>
    %cst_20 = arith.constant dense<0.000000e+00> : vector<16x64xf32>
    %22 = tpu.matmul %21, %1, %cst_20 {dimension_numbers = #tpu.dot_dimension_numbers<[1], [0], [0], [1], [0, 0, 1, 1], [], []>} : vector<16x16xf32>, vector<16x64xf32>, vector<16x64xf32> -> vector<16x64xf32>
    %c2_21 = arith.constant 2 : index
    %c0_22 = arith.constant 0 : index
    %c0_23 = arith.constant 0 : index
    %23 = vector.load %arg3[%c2_21, %c0_22, %c0_23] : memref<3x64x128xbf16, #tpu.memory_space<vmem>>, vector<1x64x128xbf16>
    %24 = vector.shape_cast %23 : vector<1x64x128xbf16> to vector<64x128xbf16>
    %25 = arith.truncf %22 : vector<16x64xf32> to vector<16x64xbf16>
    %cst_24 = arith.constant dense<0.000000e+00> : vector<16x128xf32>
    %26 = tpu.matmul %25, %24, %cst_24 {dimension_numbers = #tpu.dot_dimension_numbers<[1], [0], [0], [1], [0, 0, 1, 1], [], []>} : vector<16x64xbf16>, vector<64x128xbf16>, vector<16x128xf32> -> vector<16x128xf32>
    %27 = arith.addf %19, %26 : vector<16x128xf32>
    %cst_25 = arith.constant 0.000000e+00 : f32
    %28 = vector.broadcast %cst_25 : f32 to vector<16x128xf32>
    %29 = arith.maximumf %27, %28 : vector<16x128xf32>
    %c0_26 = arith.constant 0 : index
    %c0_27 = arith.constant 0 : index
    %30 = vector.load %arg5[%c0_26, %c0_27] : memref<128x128xf32, #tpu.memory_space<vmem>>, vector<128x128xf32>
    %cst_28 = arith.constant dense<0.000000e+00> : vector<16x128xf32>
    %31 = tpu.matmul %29, %30, %cst_28 {dimension_numbers = #tpu.dot_dimension_numbers<[1], [0], [0], [1], [0, 0, 1, 1], [], []>} : vector<16x128xf32>, vector<128x128xf32>, vector<16x128xf32> -> vector<16x128xf32>
    %32 = arith.maximumf %29, %31 : vector<16x128xf32>
    %c0_29 = arith.constant 0 : index
    %c0_30 = arith.constant 0 : index
    %33 = vector.load %arg6[%c0_29, %c0_30] : memref<16x16xf32, #tpu.memory_space<vmem>>, vector<16x16xf32>
    %cst_31 = arith.constant dense<0.000000e+00> : vector<16x128xf32>
    %34 = tpu.matmul %33, %32, %cst_31 {dimension_numbers = #tpu.dot_dimension_numbers<[1], [0], [0], [1], [0, 0, 1, 1], [], []>} : vector<16x16xf32>, vector<16x128xf32>, vector<16x128xf32> -> vector<16x128xf32>
    %35 = arith.maximumf %32, %34 : vector<16x128xf32>
    %c0_32 = arith.constant 0 : index
    %c0_33 = arith.constant 0 : index
    %36 = vector.load %arg7[%c0_32, %c0_33] : memref<8x16xf32, #tpu.memory_space<vmem>>, vector<8x16xf32>
    %cst_34 = arith.constant dense<0.000000e+00> : vector<8x128xf32>
    %37 = tpu.matmul %36, %35, %cst_34 {dimension_numbers = #tpu.dot_dimension_numbers<[1], [0], [0], [1], [0, 0, 1, 1], [], []>} : vector<8x16xf32>, vector<16x128xf32>, vector<8x128xf32> -> vector<8x128xf32>
    %c0_35 = arith.constant 0 : index
    %c0_36 = arith.constant 0 : index
    %38 = vector.load %arg8[%c0_35, %c0_36] : memref<128x64xf32, #tpu.memory_space<vmem>>, vector<128x64xf32>
    %cst_37 = arith.constant dense<0.000000e+00> : vector<8x64xf32>
    %39 = tpu.matmul %37, %38, %cst_37 {dimension_numbers = #tpu.dot_dimension_numbers<[1], [0], [0], [1], [0, 0, 1, 1], [], []>} : vector<8x128xf32>, vector<128x64xf32>, vector<8x64xf32> -> vector<8x64xf32>
    %c0_38 = arith.constant 0 : index
    %c0_39 = arith.constant 0 : index
    %40 = vector.load %arg11[%c0_38, %c0_39] : memref<1x128xf32, #tpu.memory_space<vmem>>, vector<1x128xf32>
    %c0_40 = arith.constant 0 : index
    %c0_41 = arith.constant 0 : index
    %c0_42 = arith.constant 0 : index
    %41 = vector.load %arg9[%c0_40, %c0_41, %c0_42] : memref<3x8x8xf32, #tpu.memory_space<vmem>>, vector<1x8x8xf32>
    %42 = vector.shape_cast %41 : vector<1x8x8xf32> to vector<8x8xf32>
    %cst_43 = arith.constant dense<0.000000e+00> : vector<8x64xf32>
    %43 = tpu.matmul %42, %39, %cst_43 {dimension_numbers = #tpu.dot_dimension_numbers<[1], [0], [0], [1], [0, 0, 1, 1], [], []>} : vector<8x8xf32>, vector<8x64xf32>, vector<8x64xf32> -> vector<8x64xf32>
    %c0_44 = arith.constant 0 : index
    %c0_45 = arith.constant 0 : index
    %c0_46 = arith.constant 0 : index
    %44 = vector.load %arg10[%c0_44, %c0_45, %c0_46] : memref<3x64x128xbf16, #tpu.memory_space<vmem>>, vector<1x64x128xbf16>
    %45 = vector.shape_cast %44 : vector<1x64x128xbf16> to vector<64x128xbf16>
    %46 = arith.truncf %43 : vector<8x64xf32> to vector<8x64xbf16>
    %cst_47 = arith.constant dense<0.000000e+00> : vector<8x128xf32>
    %47 = tpu.matmul %46, %45, %cst_47 {dimension_numbers = #tpu.dot_dimension_numbers<[1], [0], [0], [1], [0, 0, 1, 1], [], []>} : vector<8x64xbf16>, vector<64x128xbf16>, vector<8x128xf32> -> vector<8x128xf32>
    %48 = vector.broadcast %40 : vector<1x128xf32> to vector<8x128xf32>
    %49 = arith.addf %48, %47 : vector<8x128xf32>
    %c1_48 = arith.constant 1 : index
    %c0_49 = arith.constant 0 : index
    %c0_50 = arith.constant 0 : index
    %50 = vector.load %arg9[%c1_48, %c0_49, %c0_50] : memref<3x8x8xf32, #tpu.memory_space<vmem>>, vector<1x8x8xf32>
    %51 = vector.shape_cast %50 : vector<1x8x8xf32> to vector<8x8xf32>
    %cst_51 = arith.constant dense<0.000000e+00> : vector<8x64xf32>
    %52 = tpu.matmul %51, %39, %cst_51 {dimension_numbers = #tpu.dot_dimension_numbers<[1], [0], [0], [1], [0, 0, 1, 1], [], []>} : vector<8x8xf32>, vector<8x64xf32>, vector<8x64xf32> -> vector<8x64xf32>
    %c1_52 = arith.constant 1 : index
    %c0_53 = arith.constant 0 : index
    %c0_54 = arith.constant 0 : index
    %53 = vector.load %arg10[%c1_52, %c0_53, %c0_54] : memref<3x64x128xbf16, #tpu.memory_space<vmem>>, vector<1x64x128xbf16>
    %54 = vector.shape_cast %53 : vector<1x64x128xbf16> to vector<64x128xbf16>
    %55 = arith.truncf %52 : vector<8x64xf32> to vector<8x64xbf16>
    %cst_55 = arith.constant dense<0.000000e+00> : vector<8x128xf32>
    %56 = tpu.matmul %55, %54, %cst_55 {dimension_numbers = #tpu.dot_dimension_numbers<[1], [0], [0], [1], [0, 0, 1, 1], [], []>} : vector<8x64xbf16>, vector<64x128xbf16>, vector<8x128xf32> -> vector<8x128xf32>
    %57 = arith.addf %49, %56 : vector<8x128xf32>
    %c2_56 = arith.constant 2 : index
    %c0_57 = arith.constant 0 : index
    %c0_58 = arith.constant 0 : index
    %58 = vector.load %arg9[%c2_56, %c0_57, %c0_58] : memref<3x8x8xf32, #tpu.memory_space<vmem>>, vector<1x8x8xf32>
    %59 = vector.shape_cast %58 : vector<1x8x8xf32> to vector<8x8xf32>
    %cst_59 = arith.constant dense<0.000000e+00> : vector<8x64xf32>
    %60 = tpu.matmul %59, %39, %cst_59 {dimension_numbers = #tpu.dot_dimension_numbers<[1], [0], [0], [1], [0, 0, 1, 1], [], []>} : vector<8x8xf32>, vector<8x64xf32>, vector<8x64xf32> -> vector<8x64xf32>
    %c2_60 = arith.constant 2 : index
    %c0_61 = arith.constant 0 : index
    %c0_62 = arith.constant 0 : index
    %61 = vector.load %arg10[%c2_60, %c0_61, %c0_62] : memref<3x64x128xbf16, #tpu.memory_space<vmem>>, vector<1x64x128xbf16>
    %62 = vector.shape_cast %61 : vector<1x64x128xbf16> to vector<64x128xbf16>
    %63 = arith.truncf %60 : vector<8x64xf32> to vector<8x64xbf16>
    %cst_63 = arith.constant dense<0.000000e+00> : vector<8x128xf32>
    %64 = tpu.matmul %63, %62, %cst_63 {dimension_numbers = #tpu.dot_dimension_numbers<[1], [0], [0], [1], [0, 0, 1, 1], [], []>} : vector<8x64xbf16>, vector<64x128xbf16>, vector<8x128xf32> -> vector<8x128xf32>
    %65 = arith.addf %57, %64 : vector<8x128xf32>
    %cst_64 = arith.constant 0.000000e+00 : f32
    %66 = vector.broadcast %cst_64 : f32 to vector<8x128xf32>
    %67 = arith.maximumf %65, %66 : vector<8x128xf32>
    %c0_65 = arith.constant 0 : index
    %c0_66 = arith.constant 0 : index
    %68 = vector.load %arg12[%c0_65, %c0_66] : memref<128x128xf32, #tpu.memory_space<vmem>>, vector<128x128xf32>
    %cst_67 = arith.constant dense<0.000000e+00> : vector<8x128xf32>
    %69 = tpu.matmul %67, %68, %cst_67 {dimension_numbers = #tpu.dot_dimension_numbers<[1], [0], [0], [1], [0, 0, 1, 1], [], []>} : vector<8x128xf32>, vector<128x128xf32>, vector<8x128xf32> -> vector<8x128xf32>
    %70 = arith.maximumf %67, %69 : vector<8x128xf32>
    %c0_68 = arith.constant 0 : index
    %c0_69 = arith.constant 0 : index
    %71 = vector.load %arg13[%c0_68, %c0_69] : memref<8x8xf32, #tpu.memory_space<vmem>>, vector<8x8xf32>
    %cst_70 = arith.constant dense<0.000000e+00> : vector<8x128xf32>
    %72 = tpu.matmul %71, %70, %cst_70 {dimension_numbers = #tpu.dot_dimension_numbers<[1], [0], [0], [1], [0, 0, 1, 1], [], []>} : vector<8x8xf32>, vector<8x128xf32>, vector<8x128xf32> -> vector<8x128xf32>
    %73 = arith.maximumf %70, %72 : vector<8x128xf32>
    %c0_71 = arith.constant 0 : index
    %c0_72 = arith.constant 0 : index
    %74 = vector.load %arg14[%c0_71, %c0_72] : memref<4x8xf32, #tpu.memory_space<vmem>>, vector<4x8xf32>
    %cst_73 = arith.constant dense<0.000000e+00> : vector<4x128xf32>
    %75 = tpu.matmul %74, %73, %cst_73 {dimension_numbers = #tpu.dot_dimension_numbers<[1], [0], [0], [1], [0, 0, 1, 1], [], []>} : vector<4x8xf32>, vector<8x128xf32>, vector<4x128xf32> -> vector<4x128xf32>
    %c0_74 = arith.constant 0 : index
    %c0_75 = arith.constant 0 : index
    %76 = vector.load %arg15[%c0_74, %c0_75] : memref<128x64xf32, #tpu.memory_space<vmem>>, vector<128x64xf32>
    %cst_76 = arith.constant dense<0.000000e+00> : vector<4x64xf32>
    %77 = tpu.matmul %75, %76, %cst_76 {dimension_numbers = #tpu.dot_dimension_numbers<[1], [0], [0], [1], [0, 0, 1, 1], [], []>} : vector<4x128xf32>, vector<128x64xf32>, vector<4x64xf32> -> vector<4x64xf32>
    %c0_77 = arith.constant 0 : index
    %c0_78 = arith.constant 0 : index
    %78 = vector.load %arg16[%c0_77, %c0_78] : memref<64x5xf32, #tpu.memory_space<vmem>>, vector<64x5xf32>
    %cst_79 = arith.constant dense<0.000000e+00> : vector<4x5xf32>
    %79 = tpu.matmul %77, %78, %cst_79 {dimension_numbers = #tpu.dot_dimension_numbers<[1], [0], [0], [1], [0, 0, 1, 1], [], []>} : vector<4x64xf32>, vector<64x5xf32>, vector<4x5xf32> -> vector<4x5xf32>
    %cst_80 = arith.constant dense<0.000000e+00> : vector<5xf32>
    %80 = vector.multi_reduction <add>, %79, %cst_80 [0] : vector<4x5xf32> to vector<5xf32>
    %81 = vector.shape_cast %80 : vector<5xf32> to vector<1x5xf32>
    %c0_81 = arith.constant 0 : index
    %c0_82 = arith.constant 0 : index
    %82 = vector.load %arg18[%c0_81, %c0_82] : memref<1x5xf32, #tpu.memory_space<vmem>>, vector<1x5xf32>
    %83 = arith.addf %81, %82 : vector<1x5xf32>
    %c0_83 = arith.constant 0 : index
    %c0_84 = arith.constant 0 : index
    %84 = vector.load %arg17[%c0_83, %c0_84] : memref<64x5xf32, #tpu.memory_space<vmem>>, vector<64x5xf32>
    %cst_85 = arith.constant dense<0.000000e+00> : vector<8x5xf32>
    %85 = tpu.matmul %39, %84, %cst_85 {dimension_numbers = #tpu.dot_dimension_numbers<[1], [0], [0], [1], [0, 0, 1, 1], [], []>} : vector<8x64xf32>, vector<64x5xf32>, vector<8x5xf32> -> vector<8x5xf32>
    %cst_86 = arith.constant dense<0.000000e+00> : vector<5xf32>
    %86 = vector.multi_reduction <add>, %85, %cst_86 [0] : vector<8x5xf32> to vector<5xf32>
    %87 = vector.shape_cast %86 : vector<5xf32> to vector<1x5xf32>
    %c0_87 = arith.constant 0 : index
    %c0_88 = arith.constant 0 : index
    %88 = vector.load %arg19[%c0_87, %c0_88] : memref<1x5xf32, #tpu.memory_space<vmem>>, vector<1x5xf32>
    %89 = arith.addf %87, %88 : vector<1x5xf32>
    %c0_89 = arith.constant 0 : index
    %c0_90 = arith.constant 0 : index
    %c0_91 = arith.constant 0 : index
    %90 = vector.load %arg20[%c0_89, %c0_90, %c0_91] : memref<1x1x5xf32, #tpu.memory_space<vmem>>, vector<1x1x5xf32>
    %91 = vector.shape_cast %90 : vector<1x1x5xf32> to vector<1x5xf32>
    %92 = vector.shape_cast %83 : vector<1x5xf32> to vector<1x1x5xf32>
    tpu.vector_store %arg20[%c0_89, %c0_90, %c0_91], %92 {strides = array<i32>} : memref<1x1x5xf32, #tpu.memory_space<vmem>>, vector<1x1x5xf32>,
    %c0_92 = arith.constant 0 : index
    %c0_93 = arith.constant 0 : index
    %c0_94 = arith.constant 0 : index
    %93 = vector.load %arg21[%c0_92, %c0_93, %c0_94] : memref<1x1x5xf32, #tpu.memory_space<vmem>>, vector<1x1x5xf32>
    %94 = vector.shape_cast %93 : vector<1x1x5xf32> to vector<1x5xf32>
    %95 = vector.shape_cast %89 : vector<1x5xf32> to vector<1x1x5xf32>
    tpu.vector_store %arg21[%c0_92, %c0_93, %c0_94], %95 {strides = array<i32>} : memref<1x1x5xf32, #tpu.memory_space<vmem>>, vector<1x1x5xf32>,
    return
  }
  func.func @transform_0(%arg0: i32) -> (i32, i32, i32) {
    %c0_i32 = arith.constant 0 : i32
    %c0_i32_0 = arith.constant 0 : i32
    %c0_i32_1 = arith.constant 0 : i32
    return %arg0, %c0_i32, %c0_i32_0 : i32, i32, i32
  }
  func.func @transform_1(%arg0: i32) -> (i32, i32, i32) {
    %c0_i32 = arith.constant 0 : i32
    %c0_i32_0 = arith.constant 0 : i32
    %c0_i32_1 = arith.constant 0 : i32
    %c0_i32_2 = arith.constant 0 : i32
    return %c0_i32, %c0_i32_0, %c0_i32_1 : i32, i32, i32
  }
  func.func @transform_2(%arg0: i32) -> (i32, i32, i32) {
    %c0_i32 = arith.constant 0 : i32
    %c0_i32_0 = arith.constant 0 : i32
    %c0_i32_1 = arith.constant 0 : i32
    %c0_i32_2 = arith.constant 0 : i32
    return %c0_i32, %c0_i32_0, %c0_i32_1 : i32, i32, i32
  }
  func.func @transform_3(%arg0: i32) -> (i32, i32) {
    %c0_i32 = arith.constant 0 : i32
    %c0_i32_0 = arith.constant 0 : i32
    %c0_i32_1 = arith.constant 0 : i32
    return %c0_i32, %c0_i32_0 : i32, i32
  }
  func.func @transform_4(%arg0: i32) -> (i32, i32) {
    %c0_i32 = arith.constant 0 : i32
    %c0_i32_0 = arith.constant 0 : i32
    %c0_i32_1 = arith.constant 0 : i32
    return %c0_i32, %c0_i32_0 : i32, i32
  }
  func.func @transform_5(%arg0: i32) -> (i32, i32) {
    %c0_i32 = arith.constant 0 : i32
    %c0_i32_0 = arith.constant 0 : i32
    %c0_i32_1 = arith.constant 0 : i32
    return %c0_i32, %c0_i32_0 : i32, i32
  }
  func.func @transform_6(%arg0: i32) -> (i32, i32) {
    %c0_i32 = arith.constant 0 : i32
    %c0_i32_0 = arith.constant 0 : i32
    %c0_i32_1 = arith.constant 0 : i32
    return %c0_i32, %c0_i32_0 : i32, i32
  }
  func.func @transform_7(%arg0: i32) -> (i32, i32) {
    %c0_i32 = arith.constant 0 : i32
    %c0_i32_0 = arith.constant 0 : i32
    %c0_i32_1 = arith.constant 0 : i32
    return %c0_i32, %c0_i32_0 : i32, i32
  }
  func.func @transform_8(%arg0: i32) -> (i32, i32, i32) {
    %c0_i32 = arith.constant 0 : i32
    %c0_i32_0 = arith.constant 0 : i32
    %c0_i32_1 = arith.constant 0 : i32
    %c0_i32_2 = arith.constant 0 : i32
    return %c0_i32, %c0_i32_0, %c0_i32_1 : i32, i32, i32
  }
  func.func @transform_9(%arg0: i32) -> (i32, i32, i32) {
    %c0_i32 = arith.constant 0 : i32
    %c0_i32_0 = arith.constant 0 : i32
    %c0_i32_1 = arith.constant 0 : i32
    %c0_i32_2 = arith.constant 0 : i32
    return %c0_i32, %c0_i32_0, %c0_i32_1 : i32, i32, i32
  }
  func.func @transform_10(%arg0: i32) -> (i32, i32) {
    %c0_i32 = arith.constant 0 : i32
    %c0_i32_0 = arith.constant 0 : i32
    %c0_i32_1 = arith.constant 0 : i32
    return %c0_i32, %c0_i32_0 : i32, i32
  }
  func.func @transform_11(%arg0: i32) -> (i32, i32) {
    %c0_i32 = arith.constant 0 : i32
    %c0_i32_0 = arith.constant 0 : i32
    %c0_i32_1 = arith.constant 0 : i32
    return %c0_i32, %c0_i32_0 : i32, i32
  }
  func.func @transform_12(%arg0: i32) -> (i32, i32) {
    %c0_i32 = arith.constant 0 : i32
    %c0_i32_0 = arith.constant 0 : i32
    %c0_i32_1 = arith.constant 0 : i32
    return %c0_i32, %c0_i32_0 : i32, i32
  }
  func.func @transform_13(%arg0: i32) -> (i32, i32) {
    %c0_i32 = arith.constant 0 : i32
    %c0_i32_0 = arith.constant 0 : i32
    %c0_i32_1 = arith.constant 0 : i32
    return %c0_i32, %c0_i32_0 : i32, i32
  }
  func.func @transform_14(%arg0: i32) -> (i32, i32) {
    %c0_i32 = arith.constant 0 : i32
    %c0_i32_0 = arith.constant 0 : i32
    %c0_i32_1 = arith.constant 0 : i32
    return %c0_i32, %c0_i32_0 : i32, i32
  }
  func.func @transform_15(%arg0: i32) -> (i32, i32) {
    %c0_i32 = arith.constant 0 : i32
    %c0_i32_0 = arith.constant 0 : i32
    %c0_i32_1 = arith.constant 0 : i32
    return %c0_i32, %c0_i32_0 : i32, i32
  }
  func.func @transform_16(%arg0: i32) -> (i32, i32) {
    %c0_i32 = arith.constant 0 : i32
    %c0_i32_0 = arith.constant 0 : i32
    %c0_i32_1 = arith.constant 0 : i32
    return %c0_i32, %c0_i32_0 : i32, i32
  }
  func.func @transform_17(%arg0: i32) -> (i32, i32) {
    %c0_i32 = arith.constant 0 : i32
    %c0_i32_0 = arith.constant 0 : i32
    %c0_i32_1 = arith.constant 0 : i32
    return %c0_i32, %c0_i32_0 : i32, i32
  }
  func.func @transform_18(%arg0: i32) -> (i32, i32) {
    %c0_i32 = arith.constant 0 : i32
    %c0_i32_0 = arith.constant 0 : i32
    %c0_i32_1 = arith.constant 0 : i32
    return %c0_i32, %c0_i32_0 : i32, i32
  }
  func.func @transform_19(%arg0: i32) -> (i32, i32, i32) {
    %c0_i32 = arith.constant 0 : i32
    %c0_i32_0 = arith.constant 0 : i32
    %c0_i32_1 = arith.constant 0 : i32
    return %arg0, %c0_i32, %c0_i32_0 : i32, i32, i32
  }
  func.func @transform_20(%arg0: i32) -> (i32, i32, i32) {
    %c0_i32 = arith.constant 0 : i32
    %c0_i32_0 = arith.constant 0 : i32
    %c0_i32_1 = arith.constant 0 : i32
    return %arg0, %c0_i32, %c0_i32_0 : i32, i32, i32
  }
}

</mosaic_0001>

<llo_original>
// kernel: tpu_custom_call.1
$region0: #{tpu_custom_call.1}
  #allocation0 [shape = 'u32[]', space=smem, size = 0x4, offset = 0x4, fixed_abs, tag = 'smem constant byte address 0x4 - core index']
  #allocation1 [shape = 'u32[72,128]{1,0:T(1,128)}', space=vmem, size = 0x9000, scoped, tag = 'internal scratch']
  %s0 = inlined_call_operand.vmem [shape: f32[2,16,64], index: 0, kind: input, shape index: {}]
  %s1 = inlined_call_operand.hbm [shape: f32[3,16,16], index: 1, kind: input, shape index: {}]
  %s2 = inlined_call_operand.vmem [shape: bf16[3,64,128], index: 2, kind: input, shape index: {}]
  %s3 = inlined_call_operand.hbm [shape: f32[1,128], index: 3, kind: input, shape index: {}]
  %s4 = inlined_call_operand.vmem [shape: f32[128,128], index: 4, kind: input, shape index: {}]
  %s5 = inlined_call_operand.hbm [shape: f32[16,16], index: 5, kind: input, shape index: {}]
  %s6 = inlined_call_operand.vmem [shape: f32[8,16], index: 6, kind: input, shape index: {}]
  %s7 = inlined_call_operand.vmem [shape: f32[128,64], index: 7, kind: input, shape index: {}]
  %s8 = inlined_call_operand.hbm [shape: f32[3,8,8], index: 8, kind: input, shape index: {}]
  %s9 = inlined_call_operand.hbm [shape: bf16[3,64,128], index: 9, kind: input, shape index: {}]
  %s10 = inlined_call_operand.vmem [shape: f32[1,128], index: 10, kind: input, shape index: {}]
  %s11 = inlined_call_operand.vmem [shape: f32[128,128], index: 11, kind: input, shape index: {}]
  %s12 = inlined_call_operand.hbm [shape: f32[8,8], index: 12, kind: input, shape index: {}]
  %s13 = inlined_call_operand.vmem [shape: f32[4,8], index: 13, kind: input, shape index: {}]
  %s14 = inlined_call_operand.vmem [shape: f32[128,64], index: 14, kind: input, shape index: {}]
  %s15 = inlined_call_operand.vmem [shape: f32[64,5], index: 15, kind: input, shape index: {}]
  %s16 = inlined_call_operand.vmem [shape: f32[64,5], index: 16, kind: input, shape index: {}]
  %s17 = inlined_call_operand.vmem [shape: f32[1,5], index: 17, kind: input, shape index: {}]
  %s18 = inlined_call_operand.vmem [shape: f32[1,5], index: 18, kind: input, shape index: {}]
  %s19 = inlined_call_operand.hbm [shape: f32[2,1,5], index: 19, kind: output, shape index: {0}]
  %s20 = inlined_call_operand.hbm [shape: f32[2,1,5], index: 20, kind: output, shape index: {1}]
  %21 = xla_tuple %s19, %s20
  %s22 = sld [smem:[#allocation0]]
  $region141: #{tpu_custom_call.1} parent=0
    _
  %s24 = ssub.s32 1, %s22
  %s25 = scalar_select 0, %s24, %s22
  $region1: #{tpu_custom_call.1} parent=0
    #allocation2 [shape = 'u8[24576]{0}', space=vmem, size = 0x6000, scoped, tag = 'input window, operand 1, single buffered']
    #allocation3 [shape = 's32[2]{0}', space=sflag, size = 0x8, scoped, tag = 'scoped memory for tpu_custom_call.1']
    #allocation4 [shape = 's32[2]{0}', space=sflag, size = 0x8, scoped, tag = 'scoped memory for tpu_custom_call.1']
    #allocation5 [shape = 'u8[512]{0}', space=vmem, size = 0x400, scoped, tag = 'input window, operand 3, single buffered']
    #allocation6 [shape = 's32[1]{0}', space=sflag, size = 0x4, scoped, tag = 'scoped memory for tpu_custom_call.1']
    #allocation7 [shape = 'u8[8192]{0}', space=vmem, size = 0x2000, scoped, tag = 'input window, operand 5, single buffered']
    #allocation8 [shape = 'u8[12288]{0}', space=vmem, size = 0x3000, scoped, tag = 'input window, operand 8, single buffered']
    #allocation9 [shape = 's32[1]{0}', space=sflag, size = 0x4, scoped, tag = 'scoped memory for tpu_custom_call.1']
    #allocation10 [shape = 'u8[49152]{0}', space=vmem, size = 0xc000, scoped, tag = 'input window, operand 9, single buffered']
    #allocation11 [shape = 'u8[4096]{0}', space=vmem, size = 0x1000, scoped, tag = 'input window, operand 12, single buffered']
    #allocation12 [shape = 's32[1]{0}', space=sflag, size = 0x4, scoped, tag = 'scoped memory for tpu_custom_call.1']
    #allocation13 [shape = 'u8[1024]{0}', space=vmem, size = 0x400, scoped, tag = 'output window, operand 0']
    #allocation14 [shape = 'u8[1024]{0}', space=vmem, size = 0x400, scoped, tag = 'output window, operand 1']
    #allocation15 [shape = 's32[2]{0}', space=sflag, size = 0x8, scoped, tag = 'scoped memory for tpu_custom_call.1']
    %26 = vsyncpa [#allocation3], 0
    %27 = vsyncpa [#allocation6], 0
    %28 = vsyncpa [#allocation9], 0
    %29 = vsyncpa [#allocation12], 0
    %30 = vsyncpa [#allocation4], 0
    %s31 = scalar_lea.sflag [#allocation4], 1
    %32 = vsyncpa %s31, 0
    %33 = vsyncpa [#allocation15], 0
    %s34 = scalar_lea.sflag [#allocation15], 1
    %35 = vsyncpa %s34, 0
    loop: start=0, step=1, limit=4
    $region2: #{tpu_custom_call.1} parent=1 // loop_pre_header
      _
    $region3: #{tpu_custom_call.1} parent=1 // loop_header
      %s37 = sphi 0, %s41
      %p38 = scmp.ge.s32.totalorder %s37, 4
      %s47 = sphi 0, %s49
      %s50 = sphi 0, %s47
      %s51 = sphi 0, %s50
      %s67 = sphi 0, %s51
      %s71 = sphi 0, %s71
      %s73 = sphi 0, %s71
      %s74 = sphi 0, %s73
      %s88 = sphi 0, %s74
      %s92 = sphi 0, %s92
      %s94 = sphi 0, %s92
      %s95 = sphi 0, %s94
      %s109 = sphi 0, %s95
      %s113 = sphi 0, %s113
      %s115 = sphi 0, %s113
      %s116 = sphi 0, %s115
      %s130 = sphi 0, %s116
      %s134 = sphi 0, %s134
      %s136 = sphi 0, %s134
      %s137 = sphi 0, %s136
      %s151 = sphi 0, %s137
      %s155 = sphi 0, %s155
      %s157 = sphi 0, %s155
      %s158 = sphi 0, %s157
      %s172 = sphi 0, %s158
      %s176 = sphi 0, %s176
      %s178 = sphi 0, %s176
      %s179 = sphi 0, %s178
      %s193 = sphi 0, %s179
      %s197 = sphi 0, %s197
      %s199 = sphi 0, %s197
      %s200 = sphi 0, %s199
      %s214 = sphi 0, %s200
      %s218 = sphi 0, %s218
      %s220 = sphi 0, %s218
      %s221 = sphi 0, %s220
      %s235 = sphi 0, %s221
      %s239 = sphi 0, %s239
      %s241 = sphi 0, %s239
      %s242 = sphi 0, %s241
      %s256 = sphi 0, %s242
      %s260 = sphi 0, %s260
      %s262 = sphi 0, %s260
      %s263 = sphi 0, %s262
      %s277 = sphi 0, %s263
      %s281 = sphi 0, %s281
      %s283 = sphi 0, %s281
      %s284 = sphi 0, %s283
      %s298 = sphi 0, %s284
      %s302 = sphi 0, %s302
      %s304 = sphi 0, %s302
      %s305 = sphi 0, %s304
      %s319 = sphi 0, %s305
      %s323 = sphi 0, %s323
      %s325 = sphi 0, %s323
      %s326 = sphi 0, %s325
      %s340 = sphi 0, %s326
      %s344 = sphi 0, %s344
      %s346 = sphi 0, %s344
      %s347 = sphi 0, %s346
      %s361 = sphi 0, %s347
      %s365 = sphi 0, %s365
      %s367 = sphi 0, %s365
      %s368 = sphi 0, %s367
      %s382 = sphi 0, %s368
      %s386 = sphi 0, %s386
      %s388 = sphi 0, %s386
      %s389 = sphi 0, %s388
      %s403 = sphi 0, %s389
      %s407 = sphi 0, %s407
      %s409 = sphi 0, %s407
      %s410 = sphi 0, %s409
      %s424 = sphi 0, %s410
      %s428 = sphi 0, %s428
      %s430 = sphi 0, %s428
      %s431 = sphi 0, %s430
      %s445 = sphi 0, %s431
      %s451 = sphi 0, %s453
      %s454 = sphi 0, %s451
      %s455 = sphi 0, %s454
      %s471 = sphi 0, %s455
      %s477 = sphi 0, %s479
      %s480 = sphi 0, %s477
      %s481 = sphi 0, %s480
      %s497 = sphi 0, %s481
    $region4: #{tpu_custom_call.1} parent=1 // loop_header_branch
      %40 = sbr.rel (%p38) target = $region8
    $region5: #{tpu_custom_call.1} parent=1 // loop_body
      %s42 = ssub.s32 %s37, 1
      %s43 = ssub.s32 %s37, 2
      %s44 = sadd.s32 %s37, 1
      %s45 = ssub.s32 %s37, %s44
      %p46 = scmp.eq.s32.totalorder %s45, 0
      %s48 = sadd.s32 %s47, 1
      %s49 = scalar_select %p46, %s47, %s48
      %p52 = pneg %p46
      %p53 = scmp.eq.s32.totalorder %s37, 1
      %p54 = por %p52, %p53
      %p55 = scmp.ne.s32.totalorder %s47, %s50
      %p56 = scmp.eq.s32.totalorder %s37, 0
      %p57 = por %p55, %p56
      %p58 = scmp.ne.s32.totalorder %s47, %s50
      %p59 = scmp.eq.s32.totalorder %s42, 1
      %p60 = por %p58, %p59
      %p61 = scmp.ne.s32.totalorder %s50, %s51
      %p62 = scmp.eq.s32.totalorder %s42, 0
      %p63 = por %p61, %p62
      %p64 = scmp.ne.s32.totalorder %s50, %s51
      %p65 = scmp.eq.s32.totalorder %s43, 1
      %p66 = por %p64, %p65
      %p68 = scmp.ne.s32.totalorder %s51, %s67
      %p69 = scmp.eq.s32.totalorder %s43, 0
      %p70 = por %p68, %p69
      %s72 = sadd.s32 %s71, 1
      %p75 = scmp.eq.s32.totalorder %s37, 1
      %p76 = scmp.ne.s32.totalorder %s71, %s73
      %p77 = scmp.eq.s32.totalorder %s37, 0
      %p78 = por %p76, %p77
      %p79 = scmp.ne.s32.totalorder %s71, %s73
      %p80 = scmp.eq.s32.totalorder %s42, 1
      %p81 = por %p79, %p80
      %p82 = scmp.ne.s32.totalorder %s73, %s74
      %p83 = scmp.eq.s32.totalorder %s42, 0
      %p84 = por %p82, %p83
      %p85 = scmp.ne.s32.totalorder %s73, %s74
      %p86 = scmp.eq.s32.totalorder %s43, 1
      %p87 = por %p85, %p86
      %p89 = scmp.ne.s32.totalorder %s74, %s88
      %p90 = scmp.eq.s32.totalorder %s43, 0
      %p91 = por %p89, %p90
      %s93 = sadd.s32 %s92, 1
      %p96 = scmp.eq.s32.totalorder %s37, 1
      %p97 = scmp.ne.s32.totalorder %s92, %s94
      %p98 = scmp.eq.s32.totalorder %s37, 0
      %p99 = por %p97, %p98
      %p100 = scmp.ne.s32.totalorder %s92, %s94
      %p101 = scmp.eq.s32.totalorder %s42, 1
      %p102 = por %p100, %p101
      %p103 = scmp.ne.s32.totalorder %s94, %s95
      %p104 = scmp.eq.s32.totalorder %s42, 0
      %p105 = por %p103, %p104
      %p106 = scmp.ne.s32.totalorder %s94, %s95
      %p107 = scmp.eq.s32.totalorder %s43, 1
      %p108 = por %p106, %p107
      %p110 = scmp.ne.s32.totalorder %s95, %s109
      %p111 = scmp.eq.s32.totalorder %s43, 0
      %p112 = por %p110, %p111
      %s114 = sadd.s32 %s113, 1
      %p117 = scmp.eq.s32.totalorder %s37, 1
      %p118 = scmp.ne.s32.totalorder %s113, %s115
      %p119 = scmp.eq.s32.totalorder %s37, 0
      %p120 = por %p118, %p119
      %p121 = scmp.ne.s32.totalorder %s113, %s115
      %p122 = scmp.eq.s32.totalorder %s42, 1
      %p123 = por %p121, %p122
      %p124 = scmp.ne.s32.totalorder %s115, %s116
      %p125 = scmp.eq.s32.totalorder %s42, 0
      %p126 = por %p124, %p125
      %p127 = scmp.ne.s32.totalorder %s115, %s116
      %p128 = scmp.eq.s32.totalorder %s43, 1
      %p129 = por %p127, %p128
      %p131 = scmp.ne.s32.totalorder %s116, %s130
      %p132 = scmp.eq.s32.totalorder %s43, 0
      %p133 = por %p131, %p132
      %s135 = sadd.s32 %s134, 1
      %p138 = scmp.eq.s32.totalorder %s37, 1
      %p139 = scmp.ne.s32.totalorder %s134, %s136
      %p140 = scmp.eq.s32.totalorder %s37, 0
      %p141 = por %p139, %p140
      %p142 = scmp.ne.s32.totalorder %s134, %s136
      %p143 = scmp.eq.s32.totalorder %s42, 1
      %p144 = por %p142, %p143
      %p145 = scmp.ne.s32.totalorder %s136, %s137
      %p146 = scmp.eq.s32.totalorder %s42, 0
      %p147 = por %p145, %p146
      %p148 = scmp.ne.s32.totalorder %s136, %s137
      %p149 = scmp.eq.s32.totalorder %s43, 1
      %p150 = por %p148, %p149
      %p152 = scmp.ne.s32.totalorder %s137, %s151
      %p153 = scmp.eq.s32.totalorder %s43, 0
      %p154 = por %p152, %p153
      %s156 = sadd.s32 %s155, 1
      %p159 = scmp.eq.s32.totalorder %s37, 1
      %p160 = scmp.ne.s32.totalorder %s155, %s157
      %p161 = scmp.eq.s32.totalorder %s37, 0
      %p162 = por %p160, %p161
      %p163 = scmp.ne.s32.totalorder %s155, %s157
      %p164 = scmp.eq.s32.totalorder %s42, 1
      %p165 = por %p163, %p164
      %p166 = scmp.ne.s32.totalorder %s157, %s158
      %p167 = scmp.eq.s32.totalorder %s42, 0
      %p168 = por %p166, %p167
      %p169 = scmp.ne.s32.totalorder %s157, %s158
      %p170 = scmp.eq.s32.totalorder %s43, 1
      %p171 = por %p169, %p170
      %p173 = scmp.ne.s32.totalorder %s158, %s172
      %p174 = scmp.eq.s32.totalorder %s43, 0
      %p175 = por %p173, %p174
      %s177 = sadd.s32 %s176, 1
      %p180 = scmp.eq.s32.totalorder %s37, 1
      %p181 = scmp.ne.s32.totalorder %s176, %s178
      %p182 = scmp.eq.s32.totalorder %s37, 0
      %p183 = por %p181, %p182
      %p184 = scmp.ne.s32.totalorder %s176, %s178
      %p185 = scmp.eq.s32.totalorder %s42, 1
      %p186 = por %p184, %p185
      %p187 = scmp.ne.s32.totalorder %s178, %s179
      %p188 = scmp.eq.s32.totalorder %s42, 0
      %p189 = por %p187, %p188
      %p190 = scmp.ne.s32.totalorder %s178, %s179
      %p191 = scmp.eq.s32.totalorder %s43, 1
      %p192 = por %p190, %p191
      %p194 = scmp.ne.s32.totalorder %s179, %s193
      %p195 = scmp.eq.s32.totalorder %s43, 0
      %p196 = por %p194, %p195
      %s198 = sadd.s32 %s197, 1
      %p201 = scmp.eq.s32.totalorder %s37, 1
      %p202 = scmp.ne.s32.totalorder %s197, %s199
      %p203 = scmp.eq.s32.totalorder %s37, 0
      %p204 = por %p202, %p203
      %p205 = scmp.ne.s32.totalorder %s197, %s199
      %p206 = scmp.eq.s32.totalorder %s42, 1
      %p207 = por %p205, %p206
      %p208 = scmp.ne.s32.totalorder %s199, %s200
      %p209 = scmp.eq.s32.totalorder %s42, 0
      %p210 = por %p208, %p209
      %p211 = scmp.ne.s32.totalorder %s199, %s200
      %p212 = scmp.eq.s32.totalorder %s43, 1
      %p213 = por %p211, %p212
      %p215 = scmp.ne.s32.totalorder %s200, %s214
      %p216 = scmp.eq.s32.totalorder %s43, 0
      %p217 = por %p215, %p216
      %s219 = sadd.s32 %s218, 1
      %p222 = scmp.eq.s32.totalorder %s37, 1
      %p223 = scmp.ne.s32.totalorder %s218, %s220
      %p224 = scmp.eq.s32.totalorder %s37, 0
      %p225 = por %p223, %p224
      %p226 = scmp.ne.s32.totalorder %s218, %s220
      %p227 = scmp.eq.s32.totalorder %s42, 1
      %p228 = por %p226, %p227
      %p229 = scmp.ne.s32.totalorder %s220, %s221
      %p230 = scmp.eq.s32.totalorder %s42, 0
      %p231 = por %p229, %p230
      %p232 = scmp.ne.s32.totalorder %s220, %s221
      %p233 = scmp.eq.s32.totalorder %s43, 1
      %p234 = por %p232, %p233
      %p236 = scmp.ne.s32.totalorder %s221, %s235
      %p237 = scmp.eq.s32.totalorder %s43, 0
      %p238 = por %p236, %p237
      %s240 = sadd.s32 %s239, 1
      %p243 = scmp.eq.s32.totalorder %s37, 1
      %p244 = scmp.ne.s32.totalorder %s239, %s241
      %p245 = scmp.eq.s32.totalorder %s37, 0
      %p246 = por %p244, %p245
      %p247 = scmp.ne.s32.totalorder %s239, %s241
      %p248 = scmp.eq.s32.totalorder %s42, 1
      %p249 = por %p247, %p248
      %p250 = scmp.ne.s32.totalorder %s241, %s242
      %p251 = scmp.eq.s32.totalorder %s42, 0
      %p252 = por %p250, %p251
      %p253 = scmp.ne.s32.totalorder %s241, %s242
      %p254 = scmp.eq.s32.totalorder %s43, 1
      %p255 = por %p253, %p254
      %p257 = scmp.ne.s32.totalorder %s242, %s256
      %p258 = scmp.eq.s32.totalorder %s43, 0
      %p259 = por %p257, %p258
      %s261 = sadd.s32 %s260, 1
      %p264 = scmp.eq.s32.totalorder %s37, 1
      %p265 = scmp.ne.s32.totalorder %s260, %s262
      %p266 = scmp.eq.s32.totalorder %s37, 0
      %p267 = por %p265, %p266
      %p268 = scmp.ne.s32.totalorder %s260, %s262
      %p269 = scmp.eq.s32.totalorder %s42, 1
      %p270 = por %p268, %p269
      %p271 = scmp.ne.s32.totalorder %s262, %s263
      %p272 = scmp.eq.s32.totalorder %s42, 0
      %p273 = por %p271, %p272
      %p274 = scmp.ne.s32.totalorder %s262, %s263
      %p275 = scmp.eq.s32.totalorder %s43, 1
      %p276 = por %p274, %p275
      %p278 = scmp.ne.s32.totalorder %s263, %s277
      %p279 = scmp.eq.s32.totalorder %s43, 0
      %p280 = por %p278, %p279
      %s282 = sadd.s32 %s281, 1
      %p285 = scmp.eq.s32.totalorder %s37, 1
      %p286 = scmp.ne.s32.totalorder %s281, %s283
      %p287 = scmp.eq.s32.totalorder %s37, 0
      %p288 = por %p286, %p287
      %p289 = scmp.ne.s32.totalorder %s281, %s283
      %p290 = scmp.eq.s32.totalorder %s42, 1
      %p291 = por %p289, %p290
      %p292 = scmp.ne.s32.totalorder %s283, %s284
      %p293 = scmp.eq.s32.totalorder %s42, 0
      %p294 = por %p292, %p293
      %p295 = scmp.ne.s32.totalorder %s283, %s284
      %p296 = scmp.eq.s32.totalorder %s43, 1
      %p297 = por %p295, %p296
      %p299 = scmp.ne.s32.totalorder %s284, %s298
      %p300 = scmp.eq.s32.totalorder %s43, 0
      %p301 = por %p299, %p300
      %s303 = sadd.s32 %s302, 1
      %p306 = scmp.eq.s32.totalorder %s37, 1
      %p307 = scmp.ne.s32.totalorder %s302, %s304
      %p308 = scmp.eq.s32.totalorder %s37, 0
      %p309 = por %p307, %p308
      %p310 = scmp.ne.s32.totalorder %s302, %s304
      %p311 = scmp.eq.s32.totalorder %s42, 1
      %p312 = por %p310, %p311
      %p313 = scmp.ne.s32.totalorder %s304, %s305
      %p314 = scmp.eq.s32.totalorder %s42, 0
      %p315 = por %p313, %p314
      %p316 = scmp.ne.s32.totalorder %s304, %s305
      %p317 = scmp.eq.s32.totalorder %s43, 1
      %p318 = por %p316, %p317
      %p320 = scmp.ne.s32.totalorder %s305, %s319
      %p321 = scmp.eq.s32.totalorder %s43, 0
      %p322 = por %p320, %p321
      %s324 = sadd.s32 %s323, 1
      %p327 = scmp.eq.s32.totalorder %s37, 1
      %p328 = scmp.ne.s32.totalorder %s323, %s325
      %p329 = scmp.eq.s32.totalorder %s37, 0
      %p330 = por %p328, %p329
      %p331 = scmp.ne.s32.totalorder %s323, %s325
      %p332 = scmp.eq.s32.totalorder %s42, 1
      %p333 = por %p331, %p332
      %p334 = scmp.ne.s32.totalorder %s325, %s326
      %p335 = scmp.eq.s32.totalorder %s42, 0
      %p336 = por %p334, %p335
      %p337 = scmp.ne.s32.totalorder %s325, %s326
      %p338 = scmp.eq.s32.totalorder %s43, 1
      %p339 = por %p337, %p338
      %p341 = scmp.ne.s32.totalorder %s326, %s340
      %p342 = scmp.eq.s32.totalorder %s43, 0
      %p343 = por %p341, %p342
      %s345 = sadd.s32 %s344, 1
      %p348 = scmp.eq.s32.totalorder %s37, 1
      %p349 = scmp.ne.s32.totalorder %s344, %s346
      %p350 = scmp.eq.s32.totalorder %s37, 0
      %p351 = por %p349, %p350
      %p352 = scmp.ne.s32.totalorder %s344, %s346
      %p353 = scmp.eq.s32.totalorder %s42, 1
      %p354 = por %p352, %p353
      %p355 = scmp.ne.s32.totalorder %s346, %s347
      %p356 = scmp.eq.s32.totalorder %s42, 0
      %p357 = por %p355, %p356
      %p358 = scmp.ne.s32.totalorder %s346, %s347
      %p359 = scmp.eq.s32.totalorder %s43, 1
      %p360 = por %p358, %p359
      %p362 = scmp.ne.s32.totalorder %s347, %s361
      %p363 = scmp.eq.s32.totalorder %s43, 0
      %p364 = por %p362, %p363
      %s366 = sadd.s32 %s365, 1
      %p369 = scmp.eq.s32.totalorder %s37, 1
      %p370 = scmp.ne.s32.totalorder %s365, %s367
      %p371 = scmp.eq.s32.totalorder %s37, 0
      %p372 = por %p370, %p371
      %p373 = scmp.ne.s32.totalorder %s365, %s367
      %p374 = scmp.eq.s32.totalorder %s42, 1
      %p375 = por %p373, %p374
      %p376 = scmp.ne.s32.totalorder %s367, %s368
      %p377 = scmp.eq.s32.totalorder %s42, 0
      %p378 = por %p376, %p377
      %p379 = scmp.ne.s32.totalorder %s367, %s368
      %p380 = scmp.eq.s32.totalorder %s43, 1
      %p381 = por %p379, %p380
      %p383 = scmp.ne.s32.totalorder %s368, %s382
      %p384 = scmp.eq.s32.totalorder %s43, 0
      %p385 = por %p383, %p384
      %s387 = sadd.s32 %s386, 1
      %p390 = scmp.eq.s32.totalorder %s37, 1
      %p391 = scmp.ne.s32.totalorder %s386, %s388
      %p392 = scmp.eq.s32.totalorder %s37, 0
      %p393 = por %p391, %p392
      %p394 = scmp.ne.s32.totalorder %s386, %s388
      %p395 = scmp.eq.s32.totalorder %s42, 1
      %p396 = por %p394, %p395
      %p397 = scmp.ne.s32.totalorder %s388, %s389
      %p398 = scmp.eq.s32.totalorder %s42, 0
      %p399 = por %p397, %p398
      %p400 = scmp.ne.s32.totalorder %s388, %s389
      %p401 = scmp.eq.s32.totalorder %s43, 1
      %p402 = por %p400, %p401
      %p404 = scmp.ne.s32.totalorder %s389, %s403
      %p405 = scmp.eq.s32.totalorder %s43, 0
      %p406 = por %p404, %p405
      %s408 = sadd.s32 %s407, 1
      %p411 = scmp.eq.s32.totalorder %s37, 1
      %p412 = scmp.ne.s32.totalorder %s407, %s409
      %p413 = scmp.eq.s32.totalorder %s37, 0
      %p414 = por %p412, %p413
      %p415 = scmp.ne.s32.totalorder %s407, %s409
      %p416 = scmp.eq.s32.totalorder %s42, 1
      %p417 = por %p415, %p416
      %p418 = scmp.ne.s32.totalorder %s409, %s410
      %p419 = scmp.eq.s32.totalorder %s42, 0
      %p420 = por %p418, %p419
      %p421 = scmp.ne.s32.totalorder %s409, %s410
      %p422 = scmp.eq.s32.totalorder %s43, 1
      %p423 = por %p421, %p422
      %p425 = scmp.ne.s32.totalorder %s410, %s424
      %p426 = scmp.eq.s32.totalorder %s43, 0
      %p427 = por %p425, %p426
      %s429 = sadd.s32 %s428, 1
      %p432 = scmp.eq.s32.totalorder %s37, 1
      %p433 = scmp.ne.s32.totalorder %s428, %s430
      %p434 = scmp.eq.s32.totalorder %s37, 0
      %p435 = por %p433, %p434
      %p436 = scmp.ne.s32.totalorder %s428, %s430
      %p437 = scmp.eq.s32.totalorder %s42, 1
      %p438 = por %p436, %p437
      %p439 = scmp.ne.s32.totalorder %s430, %s431
      %p440 = scmp.eq.s32.totalorder %s42, 0
      %p441 = por %p439, %p440
      %p442 = scmp.ne.s32.totalorder %s430, %s431
      %p443 = scmp.eq.s32.totalorder %s43, 1
      %p444 = por %p442, %p443
      %p446 = scmp.ne.s32.totalorder %s431, %s445
      %p447 = scmp.eq.s32.totalorder %s43, 0
      %p448 = por %p446, %p447
      %s449 = ssub.s32 %s37, %s44
      %p450 = scmp.eq.s32.totalorder %s449, 0
      %s452 = sadd.s32 %s451, 1
      %s453 = scalar_select %p450, %s451, %s452
      %p456 = pneg %p450
      %p457 = scmp.eq.s32.totalorder %s37, 1
      %p458 = por %p456, %p457
      %p459 = scmp.ne.s32.totalorder %s451, %s454
      %p460 = scmp.eq.s32.totalorder %s37, 0
      %p461 = por %p459, %p460
      %p462 = scmp.ne.s32.totalorder %s451, %s454
      %p463 = scmp.eq.s32.totalorder %s42, 1
      %p464 = por %p462, %p463
      %p465 = scmp.ne.s32.totalorder %s454, %s455
      %p466 = scmp.eq.s32.totalorder %s42, 0
      %p467 = por %p465, %p466
      %p468 = scmp.ne.s32.totalorder %s454, %s455
      %p469 = scmp.eq.s32.totalorder %s43, 1
      %p470 = por %p468, %p469
      %p472 = scmp.ne.s32.totalorder %s455, %s471
      %p473 = scmp.eq.s32.totalorder %s43, 0
      %p474 = por %p472, %p473
      %s475 = ssub.s32 %s37, %s44
      %p476 = scmp.eq.s32.totalorder %s475, 0
      %s478 = sadd.s32 %s477, 1
      %s479 = scalar_select %p476, %s477, %s478
      %p482 = pneg %p476
      %p483 = scmp.eq.s32.totalorder %s37, 1
      %p484 = por %p482, %p483
      %p485 = scmp.ne.s32.totalorder %s477, %s480
      %p486 = scmp.eq.s32.totalorder %s37, 0
      %p487 = por %p485, %p486
      %p488 = scmp.ne.s32.totalorder %s477, %s480
      %p489 = scmp.eq.s32.totalorder %s42, 1
      %p490 = por %p488, %p489
      %p491 = scmp.ne.s32.totalorder %s480, %s481
      %p492 = scmp.eq.s32.totalorder %s42, 0
      %p493 = por %p491, %p492
      %p494 = scmp.ne.s32.totalorder %s480, %s481
      %p495 = scmp.eq.s32.totalorder %s43, 1
      %p496 = por %p494, %p495
      %p498 = scmp.ne.s32.totalorder %s481, %s497
      %p499 = scmp.eq.s32.totalorder %s43, 0
      %p500 = por %p498, %p499
      %p501 = scmp.le.s32.totalorder 1, %s37
      %p502 = scmp.lt.s32.totalorder %s37, 3
      %p503 = pnand %p501, %p502
      %p504 = pneg %p503
      // Predicated region
      $region9: #{tpu_custom_call.1} parent=5 // pred_check
        _
      $region10: #{tpu_custom_call.1} parent=5 // pred_check_branch
        %506 = sbr.rel (%p503) target = $region12
      $region11: #{tpu_custom_call.1} parent=5 // pred_region
        %s507 = ssub.s32 %s37, 1
        // Predicated region
        $region13: #{tpu_custom_call.1} parent=11 // pred_check
          %p508 = pneg %p84
        $region14: #{tpu_custom_call.1} parent=11 // pred_check_branch
          %510 = sbr.rel (%p508) target = $region16
        $region15: #{tpu_custom_call.1} parent=11 // pred_region
          %512 = vsyncadd [#allocation3], 0
          %s513 = sshll.u32 %s1, 4
          %s514 = int_to_ptr.hbm [resolvable:$true] %s513
          %s515 = sshll.u32 [#allocation2], 4
          %s516 = int_to_ptr.vmem [resolvable:$true] %s515
          %521 = dma.hbm_to_vmem [thread:$0]  %s514, 768, %s516, [#allocation3], 128, 128, 8
        $region16: #{tpu_custom_call.1} parent=11 // pred_fallthru
          _
        // Predicated region
        $region17: #{tpu_custom_call.1} parent=11 // pred_check
          %p522 = pneg %p105
        $region18: #{tpu_custom_call.1} parent=11 // pred_check_branch
          %524 = sbr.rel (%p522) target = $region20
        $region19: #{tpu_custom_call.1} parent=11 // pred_region
          _
        $region20: #{tpu_custom_call.1} parent=11 // pred_fallthru
          _
        // Predicated region
        $region21: #{tpu_custom_call.1} parent=11 // pred_check
          %p525 = pneg %p126
        $region22: #{tpu_custom_call.1} parent=11 // pred_check_branch
          %527 = sbr.rel (%p525) target = $region24
        $region23: #{tpu_custom_call.1} parent=11 // pred_region
          %529 = vsyncadd [#allocation6], 0
          %s531 = sshll.u32 %s3, 4
          %s532 = int_to_ptr.hbm [resolvable:$true] %s531
          %s533 = sshll.u32 [#allocation5], 4
          %s534 = int_to_ptr.vmem [resolvable:$true] %s533
          %536 = dma.hbm_to_vmem [thread:$0]  %s532, 16, %s534, [#allocation6]
        $region24: #{tpu_custom_call.1} parent=11 // pred_fallthru
          _
        // Predicated region
        $region25: #{tpu_custom_call.1} parent=11 // pred_check
          %p537 = pneg %p147
        $region26: #{tpu_custom_call.1} parent=11 // pred_check_branch
          %539 = sbr.rel (%p537) target = $region28
        $region27: #{tpu_custom_call.1} parent=11 // pred_region
          _
        $region28: #{tpu_custom_call.1} parent=11 // pred_fallthru
          _
        // Predicated region
        $region29: #{tpu_custom_call.1} parent=11 // pred_check
          %p540 = pneg %p168
        $region30: #{tpu_custom_call.1} parent=11 // pred_check_branch
          %542 = sbr.rel (%p540) target = $region32
        $region31: #{tpu_custom_call.1} parent=11 // pred_region
          %544 = vsyncadd [#allocation6], 0
          %s545 = sshll.u32 %s5, 4
          %s546 = int_to_ptr.hbm [resolvable:$true] %s545
          %s547 = sshll.u32 [#allocation7], 4
          %s548 = int_to_ptr.vmem [resolvable:$true] %s547
          %553 = dma.hbm_to_vmem [thread:$0]  %s546, 256, %s548, [#allocation6], 128, 128, 8
        $region32: #{tpu_custom_call.1} parent=11 // pred_fallthru
          _
        // Predicated region
        $region33: #{tpu_custom_call.1} parent=11 // pred_check
          %p554 = pneg %p189
        $region34: #{tpu_custom_call.1} parent=11 // pred_check_branch
          %556 = sbr.rel (%p554) target = $region36
        $region35: #{tpu_custom_call.1} parent=11 // pred_region
          _
        $region36: #{tpu_custom_call.1} parent=11 // pred_fallthru
          _
        // Predicated region
        $region37: #{tpu_custom_call.1} parent=11 // pred_check
          %p557 = pneg %p210
        $region38: #{tpu_custom_call.1} parent=11 // pred_check_branch
          %559 = sbr.rel (%p557) target = $region40
        $region39: #{tpu_custom_call.1} parent=11 // pred_region
          _
        $region40: #{tpu_custom_call.1} parent=11 // pred_fallthru
          _
        // Predicated region
        $region41: #{tpu_custom_call.1} parent=11 // pred_check
          %p560 = pneg %p231
        $region42: #{tpu_custom_call.1} parent=11 // pred_check_branch
          %562 = sbr.rel (%p560) target = $region44
        $region43: #{tpu_custom_call.1} parent=11 // pred_region
          %564 = vsyncadd [#allocation9], 0
          %s565 = sshll.u32 %s8, 4
          %s566 = int_to_ptr.hbm [resolvable:$true] %s565
          %s567 = sshll.u32 [#allocation8], 4
          %s568 = int_to_ptr.vmem [resolvable:$true] %s567
          %573 = dma.hbm_to_vmem [thread:$0]  %s566, 384, %s568, [#allocation9], 128, 128, 8
        $region44: #{tpu_custom_call.1} parent=11 // pred_fallthru
          _
        // Predicated region
        $region45: #{tpu_custom_call.1} parent=11 // pred_check
          %p574 = pneg %p252
        $region46: #{tpu_custom_call.1} parent=11 // pred_check_branch
          %576 = sbr.rel (%p574) target = $region48
        $region47: #{tpu_custom_call.1} parent=11 // pred_region
          %578 = vsyncadd [#allocation9], 0
          %s579 = sshll.u32 %s9, 4
          %s580 = int_to_ptr.hbm [resolvable:$true] %s579
          %s581 = sshll.u32 [#allocation10], 4
          %s582 = int_to_ptr.vmem [resolvable:$true] %s581
          %587 = dma.hbm_to_vmem [thread:$0]  %s580, 1536, %s582, [#allocation9], 64, 64, 4
        $region48: #{tpu_custom_call.1} parent=11 // pred_fallthru
          _
        // Predicated region
        $region49: #{tpu_custom_call.1} parent=11 // pred_check
          %p588 = pneg %p273
        $region50: #{tpu_custom_call.1} parent=11 // pred_check_branch
          %590 = sbr.rel (%p588) target = $region52
        $region51: #{tpu_custom_call.1} parent=11 // pred_region
          _
        $region52: #{tpu_custom_call.1} parent=11 // pred_fallthru
          _
        // Predicated region
        $region53: #{tpu_custom_call.1} parent=11 // pred_check
          %p591 = pneg %p294
        $region54: #{tpu_custom_call.1} parent=11 // pred_check_branch
          %593 = sbr.rel (%p591) target = $region56
        $region55: #{tpu_custom_call.1} parent=11 // pred_region
          _
        $region56: #{tpu_custom_call.1} parent=11 // pred_fallthru
          _
        // Predicated region
        $region57: #{tpu_custom_call.1} parent=11 // pred_check
          %p594 = pneg %p315
        $region58: #{tpu_custom_call.1} parent=11 // pred_check_branch
          %596 = sbr.rel (%p594) target = $region60
        $region59: #{tpu_custom_call.1} parent=11 // pred_region
          %598 = vsyncadd [#allocation12], 0
          %s600 = sshll.u32 %s12, 4
          %s601 = int_to_ptr.hbm [resolvable:$true] %s600
          %s602 = sshll.u32 [#allocation11], 4
          %s603 = int_to_ptr.vmem [resolvable:$true] %s602
          %605 = dma.hbm_to_vmem [thread:$0]  %s601, 128, %s603, [#allocation12]
        $region60: #{tpu_custom_call.1} parent=11 // pred_fallthru
          _
        // Predicated region
        $region61: #{tpu_custom_call.1} parent=11 // pred_check
          %p606 = pneg %p336
        $region62: #{tpu_custom_call.1} parent=11 // pred_check_branch
          %608 = sbr.rel (%p606) target = $region64
        $region63: #{tpu_custom_call.1} parent=11 // pred_region
          _
        $region64: #{tpu_custom_call.1} parent=11 // pred_fallthru
          _
        // Predicated region
        $region65: #{tpu_custom_call.1} parent=11 // pred_check
          %p609 = pneg %p357
        $region66: #{tpu_custom_call.1} parent=11 // pred_check_branch
          %611 = sbr.rel (%p609) target = $region68
        $region67: #{tpu_custom_call.1} parent=11 // pred_region
          _
        $region68: #{tpu_custom_call.1} parent=11 // pred_fallthru
          _
        // Predicated region
        $region69: #{tpu_custom_call.1} parent=11 // pred_check
          %p612 = pneg %p378
        $region70: #{tpu_custom_call.1} parent=11 // pred_check_branch
          %614 = sbr.rel (%p612) target = $region72
        $region71: #{tpu_custom_call.1} parent=11 // pred_region
          _
        $region72: #{tpu_custom_call.1} parent=11 // pred_fallthru
          _
        // Predicated region
        $region73: #{tpu_custom_call.1} parent=11 // pred_check
          %p615 = pneg %p399
        $region74: #{tpu_custom_call.1} parent=11 // pred_check_branch
          %617 = sbr.rel (%p615) target = $region76
        $region75: #{tpu_custom_call.1} parent=11 // pred_region
          _
        $region76: #{tpu_custom_call.1} parent=11 // pred_fallthru
          _
        // Predicated region
        $region77: #{tpu_custom_call.1} parent=11 // pred_check
          %p618 = pneg %p420
        $region78: #{tpu_custom_call.1} parent=11 // pred_check_branch
          %620 = sbr.rel (%p618) target = $region80
        $region79: #{tpu_custom_call.1} parent=11 // pred_region
          _
        $region80: #{tpu_custom_call.1} parent=11 // pred_fallthru
          _
        // Predicated region
        $region81: #{tpu_custom_call.1} parent=11 // pred_check
          %p621 = pneg %p441
        $region82: #{tpu_custom_call.1} parent=11 // pred_check_branch
          %623 = sbr.rel (%p621) target = $region84
        $region83: #{tpu_custom_call.1} parent=11 // pred_region
          _
        $region84: #{tpu_custom_call.1} parent=11 // pred_fallthru
          _
      $region12: #{tpu_custom_call.1} parent=5 // pred_fallthru
        _
      %p624 = scmp.lt.s32.totalorder %s37, 2
      // Predicated region
      $region85: #{tpu_custom_call.1} parent=5 // pred_check
        %p625 = pneg %p624
      $region86: #{tpu_custom_call.1} parent=5 // pred_check_branch
        %627 = sbr.rel (%p625) target = $region88
      $region87: #{tpu_custom_call.1} parent=5 // pred_region
        // Predicated region
        $region89: #{tpu_custom_call.1} parent=87 // pred_check
          %p628 = pneg %p57
        $region90: #{tpu_custom_call.1} parent=87 // pred_check_branch
          %630 = sbr.rel (%p628) target = $region92
        $region91: #{tpu_custom_call.1} parent=87 // pred_region
          %p631 = scmp.lt.s32.totalorder %s37, 1
          %s632 = scalar_select %p631, %s37, 1
          %s633 = smul.addr %s632, 2
          %s634 = smul.addr %s633, 8
          %s635 = scalar_lea.vmem %s0, %s634
        $region92: #{tpu_custom_call.1} parent=87 // pred_fallthru
          _
      $region88: #{tpu_custom_call.1} parent=5 // pred_fallthru
        _
      %p636 = scmp.le.s32.totalorder 1, %s37
      %p637 = scmp.lt.s32.totalorder %s37, 3
      %p638 = pnand %p636, %p637
      %p639 = pneg %p638
      // Predicated region
      $region93: #{tpu_custom_call.1} parent=5 // pred_check
        _
      $region94: #{tpu_custom_call.1} parent=5 // pred_check_branch
        %641 = sbr.rel (%p638) target = $region96
      $region95: #{tpu_custom_call.1} parent=5 // pred_region
        %s642 = ssub.s32 %s37, 1
        // Predicated region
        $region97: #{tpu_custom_call.1} parent=95 // pred_check
          %p643 = pneg %p84
        $region98: #{tpu_custom_call.1} parent=95 // pred_check_branch
          %645 = sbr.rel (%p643) target = $region100
        $region99: #{tpu_custom_call.1} parent=95 // pred_region
          %647 = dma.done [#allocation3], 768
        $region100: #{tpu_custom_call.1} parent=95 // pred_fallthru
          _
        // Predicated region
        $region101: #{tpu_custom_call.1} parent=95 // pred_check
          %p648 = pneg %p126
        $region102: #{tpu_custom_call.1} parent=95 // pred_check_branch
          %650 = sbr.rel (%p648) target = $region104
        $region103: #{tpu_custom_call.1} parent=95 // pred_region
          %652 = dma.done [#allocation6], 16
        $region104: #{tpu_custom_call.1} parent=95 // pred_fallthru
          _
        // Predicated region
        $region105: #{tpu_custom_call.1} parent=95 // pred_check
          %p653 = pneg %p168
        $region106: #{tpu_custom_call.1} parent=95 // pred_check_branch
          %655 = sbr.rel (%p653) target = $region108
        $region107: #{tpu_custom_call.1} parent=95 // pred_region
          %657 = dma.done [#allocation6], 256
        $region108: #{tpu_custom_call.1} parent=95 // pred_fallthru
          _
        // Predicated region
        $region109: #{tpu_custom_call.1} parent=95 // pred_check
          %p658 = pneg %p231
        $region110: #{tpu_custom_call.1} parent=95 // pred_check_branch
          %660 = sbr.rel (%p658) target = $region112
        $region111: #{tpu_custom_call.1} parent=95 // pred_region
          %662 = dma.done [#allocation9], 384
        $region112: #{tpu_custom_call.1} parent=95 // pred_fallthru
          _
        // Predicated region
        $region113: #{tpu_custom_call.1} parent=95 // pred_check
          %p663 = pneg %p252
        $region114: #{tpu_custom_call.1} parent=95 // pred_check_branch
          %665 = sbr.rel (%p663) target = $region116
        $region115: #{tpu_custom_call.1} parent=95 // pred_region
          %667 = dma.done [#allocation9], 1536
        $region116: #{tpu_custom_call.1} parent=95 // pred_fallthru
          _
        // Predicated region
        $region117: #{tpu_custom_call.1} parent=95 // pred_check
          %p668 = pneg %p315
        $region118: #{tpu_custom_call.1} parent=95 // pred_check_branch
          %670 = sbr.rel (%p668) target = $region120
        $region119: #{tpu_custom_call.1} parent=95 // pred_region
          %672 = dma.done [#allocation12], 128
        $region120: #{tpu_custom_call.1} parent=95 // pred_fallthru
          _
        %p673 = scmp.lt.s32.totalorder %s42, 1
        %s674 = scalar_select %p673, %s42, 1
        %s675 = smul.addr %s674, 2
        %s676 = smul.addr %s675, 8
        %s677 = scalar_lea.vmem %s0, %s676
        %p678 = pneg %p63
        %p679 = pneg %p60
        %p680 = pneg %p84
        %p681 = pneg %p81
        %p682 = pneg %p105
        %p683 = pneg %p102
        %p684 = pneg %p126
        %p685 = pneg %p123
        %p686 = pneg %p147
        %p687 = pneg %p144
        %p688 = pneg %p168
        %p689 = pneg %p165
        %p690 = pneg %p189
        %p691 = pneg %p186
        %p692 = pneg %p210
        %p693 = pneg %p207
        %p694 = pneg %p231
        %p695 = pneg %p228
        %p696 = pneg %p252
        %p697 = pneg %p249
        %p698 = pneg %p273
        %p699 = pneg %p270
        %p700 = pneg %p294
        %p701 = pneg %p291
        %p702 = pneg %p315
        %p703 = pneg %p312
        %p704 = pneg %p336
        %p705 = pneg %p333
        %p706 = pneg %p357
        %p707 = pneg %p354
        %p708 = pneg %p378
        %p709 = pneg %p375
        %p710 = pneg %p399
        %p711 = pneg %p396
        %p712 = pneg %p420
        %p713 = pneg %p417
        %p714 = pneg %p441
        %p715 = pneg %p438
        %p716 = pneg %p467
        %p717 = pneg %p464
        %s718 = sand.u32 %s454, 1
        %s719 = scalar_lea.sflag [#allocation4], %s718
        %s720 = sand.u32 %s454, 1
        %s721 = scalar_lea.vmem [#allocation13], %s720
        %p722 = pneg %p493
        %p723 = pneg %p490
        %s724 = sand.u32 %s480, 1
        %s725 = scalar_lea.sflag [#allocation15], %s724
        %s726 = sand.u32 %s480, 1
        %s727 = scalar_lea.vmem [#allocation14], %s726
        %p728 = scmp.lt.s32.totalorder %s42, 1
        %s729 = scalar_select %p728, %s42, 1
        %s730 = smul.addr %s729, 2
        %s731 = smul.addr %s730, 8
        %s732 = scalar_lea.vmem %s0, %s731
        %v734 = vld [vmem:[%s732] sm:$0xff]
        %v735 = vld [vmem:[%s732 + $0x8] sm:$0xff]
        %v736 = vld [vmem:[#allocation5] sm:$0x1]
        %v737 = vld [vmem:[#allocation2] sm:$0xff]
        %v738 = vld [vmem:[#allocation2 + $0x8] sm:$0xff]
        %vm739 = vcmask 130048
        %v741 = vsel %vm739, %v737, 0
        %v744 = vsel %vm739, %v738, 0
        %746 = vmatpush.msra.mxu0 0.0
        %747 = vmatpush.msra.mxu0 0.0
        %748 = vmatpush.msra.mxu0 0.0
        %749 = vmatpush.msra.mxu0 0.0
        %750 = vmatpush.msra.mxu0 0.0
        %751 = vmatpush.msra.mxu0 0.0
        %752 = vmatpush.msra.mxu0 0.0
        %753 = vmatpush.msra.mxu0 0.0
        %754 = vmatpush.msra.mxu0 0.0
        %755 = vmatpush.msra.mxu0 0.0
        %756 = vmatpush.msra.mxu0 0.0
        %757 = vmatpush.msra.mxu0 0.0
        %758 = vmatpush.msra.mxu0 0.0
        %759 = vmatpush.msra.mxu0 0.0
        %760 = vmatpush.msra.mxu0 %v735
        %761 = vmatpush.msra.mxu0 %v734
        %762 = vmatmul.f32.gmra.mxu0 %v741
        %v763 = vpop.f32.mrf.mxu0
        %v764 = vadd.f32 0.0, %v763
        %765 = vmatmul.f32.gmra.mxu0 %v744
        %v766 = vpop.f32.mrf.mxu0
        %v767 = vadd.f32 0.0, %v766
        %768 = vdwg.mxu0
        %v769 = vld [vmem:[%s2] sm:$0xf]
        %v770 = vld [vmem:[%s2 + $0x4] sm:$0xf]
        %v771 = vld [vmem:[%s2 + $0x8] sm:$0xf]
        %v772 = vld [vmem:[%s2 + $0xc] sm:$0xf]
        %v773 = vld [vmem:[%s2 + $0x10] sm:$0xf]
        %v774 = vld [vmem:[%s2 + $0x14] sm:$0xf]
        %v775 = vld [vmem:[%s2 + $0x18] sm:$0xf]
        %v776 = vld [vmem:[%s2 + $0x1c] sm:$0xf]
        %v777 = vpack.c.bf16 %v767, %v764
        %v786 = vunpack.c.l.b16 %v769
        %v787 = vunpack.c.l.b16 %v770
        %v788 = vunpack.c.l.b16 %v771
        %v789 = vunpack.c.l.b16 %v772
        %v790 = vunpack.c.l.b16 %v773
        %v791 = vunpack.c.l.b16 %v774
        %v792 = vunpack.c.l.b16 %v775
        %v793 = vunpack.c.l.b16 %v776
        %v794 = vpack.c.b16 %v787, %v786
        %v795 = vpack.c.b16 %v789, %v788
        %v796 = vpack.c.b16 %v791, %v790
        %v797 = vpack.c.b16 %v793, %v792
        %vm802 = vcmask 523264
        %v804 = vsel %vm802, %v777, 0
        %806 = vmatpush.bf16.msra.mxu0 0
        %807 = vmatpush.bf16.msra.mxu0 0
        %808 = vmatpush.bf16.msra.mxu0 0
        %809 = vmatpush.bf16.msra.mxu0 0
        %810 = vmatpush.bf16.msra.mxu0 %v797
        %811 = vmatpush.bf16.msra.mxu0 %v796
        %812 = vmatpush.bf16.msra.mxu0 %v795
        %813 = vmatpush.bf16.msra.mxu0 %v794
        %814 = vmatmul.bf16.gmra.mxu0 %v804
        %v815 = vpop.f32.mrf.mxu0
        %v816 = vadd.f32 0.0, %v815
        %v817 = vpop.f32.mrf.mxu0
        %v818 = vadd.f32 0.0, %v817
        %819 = vdwg.mxu0
        %v821 = vperm.slane %v736, 0
        %v823 = vadd.f32 %v821, %v816
        %v824 = vadd.f32 %v821, %v818
        %s825 = scalar_lea.vmem [#allocation2], 16
        %v826 = vld [vmem:[%s825] sm:$0xff]
        %v827 = vld [vmem:[%s825 + $0x8] sm:$0xff]
        %v829 = vsel %vm739, %v826, 0
        %v832 = vsel %vm739, %v827, 0
        %834 = vmatpush.msra.mxu0 0.0
        %835 = vmatpush.msra.mxu0 0.0
        %836 = vmatpush.msra.mxu0 0.0
        %837 = vmatpush.msra.mxu0 0.0
        %838 = vmatpush.msra.mxu0 0.0
        %839 = vmatpush.msra.mxu0 0.0
        %840 = vmatpush.msra.mxu0 0.0
        %841 = vmatpush.msra.mxu0 0.0
        %842 = vmatpush.msra.mxu0 0.0
        %843 = vmatpush.msra.mxu0 0.0
        %844 = vmatpush.msra.mxu0 0.0
        %845 = vmatpush.msra.mxu0 0.0
        %846 = vmatpush.msra.mxu0 0.0
        %847 = vmatpush.msra.mxu0 0.0
        %848 = vmatpush.msra.mxu0 %v735
        %849 = vmatpush.msra.mxu0 %v734
        %850 = vmatmul.f32.gmra.mxu0 %v829
        %v851 = vpop.f32.mrf.mxu0
        %v852 = vadd.f32 0.0, %v851
        %853 = vmatmul.f32.gmra.mxu0 %v832
        %v854 = vpop.f32.mrf.mxu0
        %v855 = vadd.f32 0.0, %v854
        %856 = vdwg.mxu0
        %s857 = scalar_lea.vmem %s2, 32
        %v858 = vld [vmem:[%s857] sm:$0xf]
        %v859 = vld [vmem:[%s857 + $0x4] sm:$0xf]
        %v860 = vld [vmem:[%s857 + $0x8] sm:$0xf]
        %v861 = vld [vmem:[%s857 + $0xc] sm:$0xf]
        %v862 = vld [vmem:[%s857 + $0x10] sm:$0xf]
        %v863 = vld [vmem:[%s857 + $0x14] sm:$0xf]
        %v864 = vld [vmem:[%s857 + $0x18] sm:$0xf]
        %v865 = vld [vmem:[%s857 + $0x1c] sm:$0xf]
        %v866 = vpack.c.bf16 %v855, %v852
        %v875 = vunpack.c.l.b16 %v858
        %v876 = vunpack.c.l.b16 %v859
        %v877 = vunpack.c.l.b16 %v860
        %v878 = vunpack.c.l.b16 %v861
        %v879 = vunpack.c.l.b16 %v862
        %v880 = vunpack.c.l.b16 %v863
        %v881 = vunpack.c.l.b16 %v864
        %v882 = vunpack.c.l.b16 %v865
        %v883 = vpack.c.b16 %v876, %v875
        %v884 = vpack.c.b16 %v878, %v877
        %v885 = vpack.c.b16 %v880, %v879
        %v886 = vpack.c.b16 %v882, %v881
        %v892 = vsel %vm802, %v866, 0
        %894 = vmatpush.bf16.msra.mxu0 0
        %895 = vmatpush.bf16.msra.mxu0 0
        %896 = vmatpush.bf16.msra.mxu0 0
        %897 = vmatpush.bf16.msra.mxu0 0
        %898 = vmatpush.bf16.msra.mxu0 %v886
        %899 = vmatpush.bf16.msra.mxu0 %v885
        %900 = vmatpush.bf16.msra.mxu0 %v884
        %901 = vmatpush.bf16.msra.mxu0 %v883
        %902 = vmatmul.bf16.gmra.mxu0 %v892
        %v903 = vpop.f32.mrf.mxu0
        %v904 = vadd.f32 0.0, %v903
        %v905 = vpop.f32.mrf.mxu0
        %v906 = vadd.f32 0.0, %v905
        %907 = vdwg.mxu0
        %v908 = vadd.f32 %v823, %v904
        %v909 = vadd.f32 %v824, %v906
        %s910 = scalar_lea.vmem [#allocation2], 32
        %v911 = vld [vmem:[%s910] sm:$0xff]
        %v912 = vld [vmem:[%s910 + $0x8] sm:$0xff]
        %v914 = vsel %vm739, %v911, 0
        %v917 = vsel %vm739, %v912, 0
        %919 = vmatpush.msra.mxu0 0.0
        %920 = vmatpush.msra.mxu0 0.0
        %921 = vmatpush.msra.mxu0 0.0
        %922 = vmatpush.msra.mxu0 0.0
        %923 = vmatpush.msra.mxu0 0.0
        %924 = vmatpush.msra.mxu0 0.0
        %925 = vmatpush.msra.mxu0 0.0
        %926 = vmatpush.msra.mxu0 0.0
        %927 = vmatpush.msra.mxu0 0.0
        %928 = vmatpush.msra.mxu0 0.0
        %929 = vmatpush.msra.mxu0 0.0
        %930 = vmatpush.msra.mxu0 0.0
        %931 = vmatpush.msra.mxu0 0.0
        %932 = vmatpush.msra.mxu0 0.0
        %933 = vmatpush.msra.mxu0 %v735
        %934 = vmatpush.msra.mxu0 %v734
        %935 = vmatmul.f32.gmra.mxu0 %v914
        %v936 = vpop.f32.mrf.mxu0
        %v937 = vadd.f32 0.0, %v936
        %938 = vmatmul.f32.gmra.mxu0 %v917
        %v939 = vpop.f32.mrf.mxu0
        %v940 = vadd.f32 0.0, %v939
        %941 = vdwg.mxu0
        %s942 = scalar_lea.vmem %s2, 64
        %v943 = vld [vmem:[%s942] sm:$0xf]
        %v944 = vld [vmem:[%s942 + $0x4] sm:$0xf]
        %v945 = vld [vmem:[%s942 + $0x8] sm:$0xf]
        %v946 = vld [vmem:[%s942 + $0xc] sm:$0xf]
        %v947 = vld [vmem:[%s942 + $0x10] sm:$0xf]
        %v948 = vld [vmem:[%s942 + $0x14] sm:$0xf]
        %v949 = vld [vmem:[%s942 + $0x18] sm:$0xf]
        %v950 = vld [vmem:[%s942 + $0x1c] sm:$0xf]
        %v951 = vpack.c.bf16 %v940, %v937
        %v960 = vunpack.c.l.b16 %v943
        %v961 = vunpack.c.l.b16 %v944
        %v962 = vunpack.c.l.b16 %v945
        %v963 = vunpack.c.l.b16 %v946
        %v964 = vunpack.c.l.b16 %v947
        %v965 = vunpack.c.l.b16 %v948
        %v966 = vunpack.c.l.b16 %v949
        %v967 = vunpack.c.l.b16 %v950
        %v968 = vpack.c.b16 %v961, %v960
        %v969 = vpack.c.b16 %v963, %v962
        %v970 = vpack.c.b16 %v965, %v964
        %v971 = vpack.c.b16 %v967, %v966
        %v977 = vsel %vm802, %v951, 0
        %979 = vmatpush.bf16.msra.mxu0 0
        %980 = vmatpush.bf16.msra.mxu0 0
        %981 = vmatpush.bf16.msra.mxu0 0
        %982 = vmatpush.bf16.msra.mxu0 0
        %983 = vmatpush.bf16.msra.mxu0 %v971
        %984 = vmatpush.bf16.msra.mxu0 %v970
        %985 = vmatpush.bf16.msra.mxu0 %v969
        %986 = vmatpush.bf16.msra.mxu0 %v968
        %987 = vmatmul.bf16.gmra.mxu0 %v977
        %v988 = vpop.f32.mrf.mxu0
        %v989 = vadd.f32 0.0, %v988
        %v990 = vpop.f32.mrf.mxu0
        %v991 = vadd.f32 0.0, %v990
        %992 = vdwg.mxu0
        %v993 = vadd.f32 %v908, %v989
        %v994 = vadd.f32 %v909, %v991
        %v995 = vmax.f32 %v993, 0.0
        %v996 = vmax.f32 %v994, 0.0
        %v997 = vld [vmem:[%s4] sm:$0xff]
        %v998 = vld [vmem:[%s4 + $0x8] sm:$0xff]
        %v999 = vld [vmem:[%s4 + $0x10] sm:$0xff]
        %v1000 = vld [vmem:[%s4 + $0x18] sm:$0xff]
        %v1001 = vld [vmem:[%s4 + $0x20] sm:$0xff]
        %v1002 = vld [vmem:[%s4 + $0x28] sm:$0xff]
        %v1003 = vld [vmem:[%s4 + $0x30] sm:$0xff]
        %v1004 = vld [vmem:[%s4 + $0x38] sm:$0xff]
        %v1005 = vld [vmem:[%s4 + $0x40] sm:$0xff]
        %v1006 = vld [vmem:[%s4 + $0x48] sm:$0xff]
        %v1007 = vld [vmem:[%s4 + $0x50] sm:$0xff]
        %v1008 = vld [vmem:[%s4 + $0x58] sm:$0xff]
        %v1009 = vld [vmem:[%s4 + $0x60] sm:$0xff]
        %v1010 = vld [vmem:[%s4 + $0x68] sm:$0xff]
        %v1011 = vld [vmem:[%s4 + $0x70] sm:$0xff]
        %v1012 = vld [vmem:[%s4 + $0x78] sm:$0xff]
        %1013 = vmatpush.msra.mxu0 %v1012
        %1014 = vmatpush.msra.mxu0 %v1011
        %1015 = vmatpush.msra.mxu0 %v1010
        %1016 = vmatpush.msra.mxu0 %v1009
        %1017 = vmatpush.msra.mxu0 %v1008
        %1018 = vmatpush.msra.mxu0 %v1007
        %1019 = vmatpush.msra.mxu0 %v1006
        %1020 = vmatpush.msra.mxu0 %v1005
        %1021 = vmatpush.msra.mxu0 %v1004
        %1022 = vmatpush.msra.mxu0 %v1003
        %1023 = vmatpush.msra.mxu0 %v1002
        %1024 = vmatpush.msra.mxu0 %v1001
        %1025 = vmatpush.msra.mxu0 %v1000
        %1026 = vmatpush.msra.mxu0 %v999
        %1027 = vmatpush.msra.mxu0 %v998
        %1028 = vmatpush.msra.mxu0 %v997
        %1029 = vmatmul.f32.gmra.mxu0 %v995
        %v1030 = vpop.f32.mrf.mxu0
        %v1031 = vadd.f32 0.0, %v1030
        %1032 = vmatmul.f32.gmra.mxu0 %v996
        %v1033 = vpop.f32.mrf.mxu0
        %v1034 = vadd.f32 0.0, %v1033
        %1035 = vdwg.mxu0
        %v1036 = vmax.f32 %v995, %v1031
        %v1037 = vmax.f32 %v996, %v1034
        %v1038 = vld [vmem:[#allocation7] sm:$0xff]
        %v1039 = vld [vmem:[#allocation7 + $0x8] sm:$0xff]
        %v1041 = vsel %vm739, %v1038, 0
        %v1044 = vsel %vm739, %v1039, 0
        %1046 = vmatpush.msra.mxu0 0.0
        %1047 = vmatpush.msra.mxu0 0.0
        %1048 = vmatpush.msra.mxu0 0.0
        %1049 = vmatpush.msra.mxu0 0.0
        %1050 = vmatpush.msra.mxu0 0.0
        %1051 = vmatpush.msra.mxu0 0.0
        %1052 = vmatpush.msra.mxu0 0.0
        %1053 = vmatpush.msra.mxu0 0.0
        %1054 = vmatpush.msra.mxu0 0.0
        %1055 = vmatpush.msra.mxu0 0.0
        %1056 = vmatpush.msra.mxu0 0.0
        %1057 = vmatpush.msra.mxu0 0.0
        %1058 = vmatpush.msra.mxu0 0.0
        %1059 = vmatpush.msra.mxu0 0.0
        %1060 = vmatpush.msra.mxu0 %v1037
        %1061 = vmatpush.msra.mxu0 %v1036
        %1062 = vmatmul.f32.gmra.mxu0 %v1041
        %v1063 = vpop.f32.mrf.mxu0
        %v1064 = vadd.f32 0.0, %v1063
        %1065 = vmatmul.f32.gmra.mxu0 %v1044
        %v1066 = vpop.f32.mrf.mxu0
        %v1067 = vadd.f32 0.0, %v1066
        %1068 = vdwg.mxu0
        %v1069 = vmax.f32 %v1036, %v1064
        %v1070 = vmax.f32 %v1037, %v1067
        %v1071 = vld [vmem:[%s6] sm:$0xff]
        %v1073 = vsel %vm739, %v1071, 0
        %1075 = vmatpush.msra.mxu0 0.0
        %1076 = vmatpush.msra.mxu0 0.0
        %1077 = vmatpush.msra.mxu0 0.0
        %1078 = vmatpush.msra.mxu0 0.0
        %1079 = vmatpush.msra.mxu0 0.0
        %1080 = vmatpush.msra.mxu0 0.0
        %1081 = vmatpush.msra.mxu0 0.0
        %1082 = vmatpush.msra.mxu0 0.0
        %1083 = vmatpush.msra.mxu0 0.0
        %1084 = vmatpush.msra.mxu0 0.0
        %1085 = vmatpush.msra.mxu0 0.0
        %1086 = vmatpush.msra.mxu0 0.0
        %1087 = vmatpush.msra.mxu0 0.0
        %1088 = vmatpush.msra.mxu0 0.0
        %1089 = vmatpush.msra.mxu0 %v1070
        %1090 = vmatpush.msra.mxu0 %v1069
        %1091 = vmatmul.f32.gmra.mxu0 %v1073
        %v1092 = vpop.f32.mrf.mxu0
        %v1093 = vadd.f32 0.0, %v1092
        %1094 = vdwg.mxu0
        %v1095 = vld [vmem:[%s7] sm:$0xff]
        %v1096 = vld [vmem:[%s7 + $0x8] sm:$0xff]
        %v1097 = vld [vmem:[%s7 + $0x10] sm:$0xff]
        %v1098 = vld [vmem:[%s7 + $0x18] sm:$0xff]
        %v1099 = vld [vmem:[%s7 + $0x20] sm:$0xff]
        %v1100 = vld [vmem:[%s7 + $0x28] sm:$0xff]
        %v1101 = vld [vmem:[%s7 + $0x30] sm:$0xff]
        %v1102 = vld [vmem:[%s7 + $0x38] sm:$0xff]
        %v1103 = vld [vmem:[%s7 + $0x40] sm:$0xff]
        %v1104 = vld [vmem:[%s7 + $0x48] sm:$0xff]
        %v1105 = vld [vmem:[%s7 + $0x50] sm:$0xff]
        %v1106 = vld [vmem:[%s7 + $0x58] sm:$0xff]
        %v1107 = vld [vmem:[%s7 + $0x60] sm:$0xff]
        %v1108 = vld [vmem:[%s7 + $0x68] sm:$0xff]
        %v1109 = vld [vmem:[%s7 + $0x70] sm:$0xff]
        %v1110 = vld [vmem:[%s7 + $0x78] sm:$0xff]
        %1111 = vmatpush.msra.mxu0 %v1110
        %1112 = vmatpush.msra.mxu0 %v1109
        %1113 = vmatpush.msra.mxu0 %v1108
        %1114 = vmatpush.msra.mxu0 %v1107
        %1115 = vmatpush.msra.mxu0 %v1106
        %1116 = vmatpush.msra.mxu0 %v1105
        %1117 = vmatpush.msra.mxu0 %v1104
        %1118 = vmatpush.msra.mxu0 %v1103
        %1119 = vmatpush.msra.mxu0 %v1102
        %1120 = vmatpush.msra.mxu0 %v1101
        %1121 = vmatpush.msra.mxu0 %v1100
        %1122 = vmatpush.msra.mxu0 %v1099
        %1123 = vmatpush.msra.mxu0 %v1098
        %1124 = vmatpush.msra.mxu0 %v1097
        %1125 = vmatpush.msra.mxu0 %v1096
        %1126 = vmatpush.msra.mxu0 %v1095
        %1127 = vmatmul.f32.gmra.mxu0 %v1093
        %v1128 = vpop.f32.mrf.mxu0
        %v1129 = vadd.f32 0.0, %v1128
        %1130 = vdwg.mxu0
        %v1131 = vld [vmem:[%s10] sm:$0x1]
        %v1132 = vld [vmem:[#allocation8] sm:$0xff]
        %vm1133 = vcmask 64512
        %v1135 = vsel %vm1133, %v1132, 0
        %1137 = vmatpush.msra.mxu0 0.0
        %1138 = vmatpush.msra.mxu0 0.0
        %1139 = vmatpush.msra.mxu0 0.0
        %1140 = vmatpush.msra.mxu0 0.0
        %1141 = vmatpush.msra.mxu0 0.0
        %1142 = vmatpush.msra.mxu0 0.0
        %1143 = vmatpush.msra.mxu0 0.0
        %1144 = vmatpush.msra.mxu0 0.0
        %1145 = vmatpush.msra.mxu0 0.0
        %1146 = vmatpush.msra.mxu0 0.0
        %1147 = vmatpush.msra.mxu0 0.0
        %1148 = vmatpush.msra.mxu0 0.0
        %1149 = vmatpush.msra.mxu0 0.0
        %1150 = vmatpush.msra.mxu0 0.0
        %1151 = vmatpush.msra.mxu0 0.0
        %1152 = vmatpush.msra.mxu0 %v1129
        %1153 = vmatmul.f32.gmra.mxu0 %v1135
        %v1154 = vpop.f32.mrf.mxu0
        %v1155 = vadd.f32 0.0, %v1154
        %1156 = vdwg.mxu0
        %v1157 = vld [vmem:[#allocation10] sm:$0xf]
        %v1158 = vld [vmem:[#allocation10 + $0x4] sm:$0xf]
        %v1159 = vld [vmem:[#allocation10 + $0x8] sm:$0xf]
        %v1160 = vld [vmem:[#allocation10 + $0xc] sm:$0xf]
        %v1161 = vld [vmem:[#allocation10 + $0x10] sm:$0xf]
        %v1162 = vld [vmem:[#allocation10 + $0x14] sm:$0xf]
        %v1163 = vld [vmem:[#allocation10 + $0x18] sm:$0xf]
        %v1164 = vld [vmem:[#allocation10 + $0x1c] sm:$0xf]
        %v1165 = vpack.c.bf16 %v1155, %v1155
        %v1174 = vunpack.c.l.b16 %v1157
        %v1175 = vunpack.c.l.b16 %v1158
        %v1176 = vunpack.c.l.b16 %v1159
        %v1177 = vunpack.c.l.b16 %v1160
        %v1178 = vunpack.c.l.b16 %v1161
        %v1179 = vunpack.c.l.b16 %v1162
        %v1180 = vunpack.c.l.b16 %v1163
        %v1181 = vunpack.c.l.b16 %v1164
        %v1182 = vpack.c.b16 %v1175, %v1174
        %v1183 = vpack.c.b16 %v1177, %v1176
        %v1184 = vpack.c.b16 %v1179, %v1178
        %v1185 = vpack.c.b16 %v1181, %v1180
        %v1191 = vsel %vm802, %v1165, 0
        %1193 = vmatpush.bf16.msra.mxu0 0
        %1194 = vmatpush.bf16.msra.mxu0 0
        %1195 = vmatpush.bf16.msra.mxu0 0
        %1196 = vmatpush.bf16.msra.mxu0 0
        %1197 = vmatpush.bf16.msra.mxu0 %v1185
        %1198 = vmatpush.bf16.msra.mxu0 %v1184
        %1199 = vmatpush.bf16.msra.mxu0 %v1183
        %1200 = vmatpush.bf16.msra.mxu0 %v1182
        %1201 = vmatmul.bf16.gmra.mxu0 %v1191
        %v1202 = vpop.f32.mrf.mxu0
        %v1203 = vadd.f32 0.0, %v1202
        %v1204 = vpop.f32.mrf.mxu0
        %1205 = vdwg.mxu0
        %v1207 = vperm.slane %v1131, 0
        %v1209 = vadd.f32 %v1207, %v1203
        %s1210 = scalar_lea.vmem [#allocation8], 8
        %v1211 = vld [vmem:[%s1210] sm:$0xff]
        %v1213 = vsel %vm1133, %v1211, 0
        %1215 = vmatpush.msra.mxu0 0.0
        %1216 = vmatpush.msra.mxu0 0.0
        %1217 = vmatpush.msra.mxu0 0.0
        %1218 = vmatpush.msra.mxu0 0.0
        %1219 = vmatpush.msra.mxu0 0.0
        %1220 = vmatpush.msra.mxu0 0.0
        %1221 = vmatpush.msra.mxu0 0.0
        %1222 = vmatpush.msra.mxu0 0.0
        %1223 = vmatpush.msra.mxu0 0.0
        %1224 = vmatpush.msra.mxu0 0.0
        %1225 = vmatpush.msra.mxu0 0.0
        %1226 = vmatpush.msra.mxu0 0.0
        %1227 = vmatpush.msra.mxu0 0.0
        %1228 = vmatpush.msra.mxu0 0.0
        %1229 = vmatpush.msra.mxu0 0.0
        %1230 = vmatpush.msra.mxu0 %v1129
        %1231 = vmatmul.f32.gmra.mxu0 %v1213
        %v1232 = vpop.f32.mrf.mxu0
        %v1233 = vadd.f32 0.0, %v1232
        %1234 = vdwg.mxu0
        %s1235 = scalar_lea.vmem [#allocation10], 32
        %v1236 = vld [vmem:[%s1235] sm:$0xf]
        %v1237 = vld [vmem:[%s1235 + $0x4] sm:$0xf]
        %v1238 = vld [vmem:[%s1235 + $0x8] sm:$0xf]
        %v1239 = vld [vmem:[%s1235 + $0xc] sm:$0xf]
        %v1240 = vld [vmem:[%s1235 + $0x10] sm:$0xf]
        %v1241 = vld [vmem:[%s1235 + $0x14] sm:$0xf]
        %v1242 = vld [vmem:[%s1235 + $0x18] sm:$0xf]
        %v1243 = vld [vmem:[%s1235 + $0x1c] sm:$0xf]
        %v1244 = vpack.c.bf16 %v1233, %v1233
        %v1253 = vunpack.c.l.b16 %v1236
        %v1254 = vunpack.c.l.b16 %v1237
        %v1255 = vunpack.c.l.b16 %v1238
        %v1256 = vunpack.c.l.b16 %v1239
        %v1257 = vunpack.c.l.b16 %v1240
        %v1258 = vunpack.c.l.b16 %v1241
        %v1259 = vunpack.c.l.b16 %v1242
        %v1260 = vunpack.c.l.b16 %v1243
        %v1261 = vpack.c.b16 %v1254, %v1253
        %v1262 = vpack.c.b16 %v1256, %v1255
        %v1263 = vpack.c.b16 %v1258, %v1257
        %v1264 = vpack.c.b16 %v1260, %v1259
        %v1270 = vsel %vm802, %v1244, 0
        %1272 = vmatpush.bf16.msra.mxu0 0
        %1273 = vmatpush.bf16.msra.mxu0 0
        %1274 = vmatpush.bf16.msra.mxu0 0
        %1275 = vmatpush.bf16.msra.mxu0 0
        %1276 = vmatpush.bf16.msra.mxu0 %v1264
        %1277 = vmatpush.bf16.msra.mxu0 %v1263
        %1278 = vmatpush.bf16.msra.mxu0 %v1262
        %1279 = vmatpush.bf16.msra.mxu0 %v1261
        %1280 = vmatmul.bf16.gmra.mxu0 %v1270
        %v1281 = vpop.f32.mrf.mxu0
        %v1282 = vadd.f32 0.0, %v1281
        %v1283 = vpop.f32.mrf.mxu0
        %1284 = vdwg.mxu0
        %v1285 = vadd.f32 %v1209, %v1282
        %s1286 = scalar_lea.vmem [#allocation8], 16
        %v1287 = vld [vmem:[%s1286] sm:$0xff]
        %v1289 = vsel %vm1133, %v1287, 0
        %1291 = vmatpush.msra.mxu0 0.0
        %1292 = vmatpush.msra.mxu0 0.0
        %1293 = vmatpush.msra.mxu0 0.0
        %1294 = vmatpush.msra.mxu0 0.0
        %1295 = vmatpush.msra.mxu0 0.0
        %1296 = vmatpush.msra.mxu0 0.0
        %1297 = vmatpush.msra.mxu0 0.0
        %1298 = vmatpush.msra.mxu0 0.0
        %1299 = vmatpush.msra.mxu0 0.0
        %1300 = vmatpush.msra.mxu0 0.0
        %1301 = vmatpush.msra.mxu0 0.0
        %1302 = vmatpush.msra.mxu0 0.0
        %1303 = vmatpush.msra.mxu0 0.0
        %1304 = vmatpush.msra.mxu0 0.0
        %1305 = vmatpush.msra.mxu0 0.0
        %1306 = vmatpush.msra.mxu0 %v1129
        %1307 = vmatmul.f32.gmra.mxu0 %v1289
        %v1308 = vpop.f32.mrf.mxu0
        %v1309 = vadd.f32 0.0, %v1308
        %1310 = vdwg.mxu0
        %s1311 = scalar_lea.vmem [#allocation10], 64
        %v1312 = vld [vmem:[%s1311] sm:$0xf]
        %v1313 = vld [vmem:[%s1311 + $0x4] sm:$0xf]
        %v1314 = vld [vmem:[%s1311 + $0x8] sm:$0xf]
        %v1315 = vld [vmem:[%s1311 + $0xc] sm:$0xf]
        %v1316 = vld [vmem:[%s1311 + $0x10] sm:$0xf]
        %v1317 = vld [vmem:[%s1311 + $0x14] sm:$0xf]
        %v1318 = vld [vmem:[%s1311 + $0x18] sm:$0xf]
        %v1319 = vld [vmem:[%s1311 + $0x1c] sm:$0xf]
        %v1320 = vpack.c.bf16 %v1309, %v1309
        %v1329 = vunpack.c.l.b16 %v1312
        %v1330 = vunpack.c.l.b16 %v1313
        %v1331 = vunpack.c.l.b16 %v1314
        %v1332 = vunpack.c.l.b16 %v1315
        %v1333 = vunpack.c.l.b16 %v1316
        %v1334 = vunpack.c.l.b16 %v1317
        %v1335 = vunpack.c.l.b16 %v1318
        %v1336 = vunpack.c.l.b16 %v1319
        %v1337 = vpack.c.b16 %v1330, %v1329
        %v1338 = vpack.c.b16 %v1332, %v1331
        %v1339 = vpack.c.b16 %v1334, %v1333
        %v1340 = vpack.c.b16 %v1336, %v1335
        %v1346 = vsel %vm802, %v1320, 0
        %1348 = vmatpush.bf16.msra.mxu0 0
        %1349 = vmatpush.bf16.msra.mxu0 0
        %1350 = vmatpush.bf16.msra.mxu0 0
        %1351 = vmatpush.bf16.msra.mxu0 0
        %1352 = vmatpush.bf16.msra.mxu0 %v1340
        %1353 = vmatpush.bf16.msra.mxu0 %v1339
        %1354 = vmatpush.bf16.msra.mxu0 %v1338
        %1355 = vmatpush.bf16.msra.mxu0 %v1337
        %1356 = vmatmul.bf16.gmra.mxu0 %v1346
        %v1357 = vpop.f32.mrf.mxu0
        %v1358 = vadd.f32 0.0, %v1357
        %v1359 = vpop.f32.mrf.mxu0
        %1360 = vdwg.mxu0
        %v1361 = vadd.f32 %v1285, %v1358
        %v1362 = vmax.f32 %v1361, 0.0
        %v1363 = vld [vmem:[%s11] sm:$0xff]
        %v1364 = vld [vmem:[%s11 + $0x8] sm:$0xff]
        %v1365 = vld [vmem:[%s11 + $0x10] sm:$0xff]
        %v1366 = vld [vmem:[%s11 + $0x18] sm:$0xff]
        %v1367 = vld [vmem:[%s11 + $0x20] sm:$0xff]
        %v1368 = vld [vmem:[%s11 + $0x28] sm:$0xff]
        %v1369 = vld [vmem:[%s11 + $0x30] sm:$0xff]
        %v1370 = vld [vmem:[%s11 + $0x38] sm:$0xff]
        %v1371 = vld [vmem:[%s11 + $0x40] sm:$0xff]
        %v1372 = vld [vmem:[%s11 + $0x48] sm:$0xff]
        %v1373 = vld [vmem:[%s11 + $0x50] sm:$0xff]
        %v1374 = vld [vmem:[%s11 + $0x58] sm:$0xff]
        %v1375 = vld [vmem:[%s11 + $0x60] sm:$0xff]
        %v1376 = vld [vmem:[%s11 + $0x68] sm:$0xff]
        %v1377 = vld [vmem:[%s11 + $0x70] sm:$0xff]
        %v1378 = vld [vmem:[%s11 + $0x78] sm:$0xff]
        %1379 = vmatpush.msra.mxu0 %v1378
        %1380 = vmatpush.msra.mxu0 %v1377
        %1381 = vmatpush.msra.mxu0 %v1376
        %1382 = vmatpush.msra.mxu0 %v1375
        %1383 = vmatpush.msra.mxu0 %v1374
        %1384 = vmatpush.msra.mxu0 %v1373
        %1385 = vmatpush.msra.mxu0 %v1372
        %1386 = vmatpush.msra.mxu0 %v1371
        %1387 = vmatpush.msra.mxu0 %v1370
        %1388 = vmatpush.msra.mxu0 %v1369
        %1389 = vmatpush.msra.mxu0 %v1368
        %1390 = vmatpush.msra.mxu0 %v1367
        %1391 = vmatpush.msra.mxu0 %v1366
        %1392 = vmatpush.msra.mxu0 %v1365
        %1393 = vmatpush.msra.mxu0 %v1364
        %1394 = vmatpush.msra.mxu0 %v1363
        %1395 = vmatmul.f32.gmra.mxu0 %v1362
        %v1396 = vpop.f32.mrf.mxu0
        %v1397 = vadd.f32 0.0, %v1396
        %1398 = vdwg.mxu0
        %v1399 = vmax.f32 %v1362, %v1397
        %v1400 = vld [vmem:[#allocation11] sm:$0xff]
        %v1402 = vsel %vm1133, %v1400, 0
        %1404 = vmatpush.msra.mxu0 0.0
        %1405 = vmatpush.msra.mxu0 0.0
        %1406 = vmatpush.msra.mxu0 0.0
        %1407 = vmatpush.msra.mxu0 0.0
        %1408 = vmatpush.msra.mxu0 0.0
        %1409 = vmatpush.msra.mxu0 0.0
        %1410 = vmatpush.msra.mxu0 0.0
        %1411 = vmatpush.msra.mxu0 0.0
        %1412 = vmatpush.msra.mxu0 0.0
        %1413 = vmatpush.msra.mxu0 0.0
        %1414 = vmatpush.msra.mxu0 0.0
        %1415 = vmatpush.msra.mxu0 0.0
        %1416 = vmatpush.msra.mxu0 0.0
        %1417 = vmatpush.msra.mxu0 0.0
        %1418 = vmatpush.msra.mxu0 0.0
        %1419 = vmatpush.msra.mxu0 %v1399
        %1420 = vmatmul.f32.gmra.mxu0 %v1402
        %v1421 = vpop.f32.mrf.mxu0
        %v1422 = vadd.f32 0.0, %v1421
        %1423 = vdwg.mxu0
        %v1424 = vmax.f32 %v1399, %v1422
        %v1425 = vld [vmem:[%s13] sm:$0xf]
        %v1427 = vsel %vm1133, %v1425, 0
        %1429 = vmatpush.msra.mxu0 0.0
        %1430 = vmatpush.msra.mxu0 0.0
        %1431 = vmatpush.msra.mxu0 0.0
        %1432 = vmatpush.msra.mxu0 0.0
        %1433 = vmatpush.msra.mxu0 0.0
        %1434 = vmatpush.msra.mxu0 0.0
        %1435 = vmatpush.msra.mxu0 0.0
        %1436 = vmatpush.msra.mxu0 0.0
        %1437 = vmatpush.msra.mxu0 0.0
        %1438 = vmatpush.msra.mxu0 0.0
        %1439 = vmatpush.msra.mxu0 0.0
        %1440 = vmatpush.msra.mxu0 0.0
        %1441 = vmatpush.msra.mxu0 0.0
        %1442 = vmatpush.msra.mxu0 0.0
        %1443 = vmatpush.msra.mxu0 0.0
        %1444 = vmatpush.msra.mxu0 %v1424
        %1445 = vmatmul.f32.gmra.mxu0 %v1427
        %v1446 = vpop.f32.mrf.mxu0
        %v1447 = vadd.f32 0.0, %v1446
        %1448 = vdwg.mxu0
        %v1449 = vld [vmem:[%s14] sm:$0xff]
        %v1450 = vld [vmem:[%s14 + $0x8] sm:$0xff]
        %v1451 = vld [vmem:[%s14 + $0x10] sm:$0xff]
        %v1452 = vld [vmem:[%s14 + $0x18] sm:$0xff]
        %v1453 = vld [vmem:[%s14 + $0x20] sm:$0xff]
        %v1454 = vld [vmem:[%s14 + $0x28] sm:$0xff]
        %v1455 = vld [vmem:[%s14 + $0x30] sm:$0xff]
        %v1456 = vld [vmem:[%s14 + $0x38] sm:$0xff]
        %v1457 = vld [vmem:[%s14 + $0x40] sm:$0xff]
        %v1458 = vld [vmem:[%s14 + $0x48] sm:$0xff]
        %v1459 = vld [vmem:[%s14 + $0x50] sm:$0xff]
        %v1460 = vld [vmem:[%s14 + $0x58] sm:$0xff]
        %v1461 = vld [vmem:[%s14 + $0x60] sm:$0xff]
        %v1462 = vld [vmem:[%s14 + $0x68] sm:$0xff]
        %v1463 = vld [vmem:[%s14 + $0x70] sm:$0xff]
        %v1464 = vld [vmem:[%s14 + $0x78] sm:$0xff]
        %1465 = vmatpush.msra.mxu0 %v1464
        %1466 = vmatpush.msra.mxu0 %v1463
        %1467 = vmatpush.msra.mxu0 %v1462
        %1468 = vmatpush.msra.mxu0 %v1461
        %1469 = vmatpush.msra.mxu0 %v1460
        %1470 = vmatpush.msra.mxu0 %v1459
        %1471 = vmatpush.msra.mxu0 %v1458
        %1472 = vmatpush.msra.mxu0 %v1457
        %1473 = vmatpush.msra.mxu0 %v1456
        %1474 = vmatpush.msra.mxu0 %v1455
        %1475 = vmatpush.msra.mxu0 %v1454
        %1476 = vmatpush.msra.mxu0 %v1453
        %1477 = vmatpush.msra.mxu0 %v1452
        %1478 = vmatpush.msra.mxu0 %v1451
        %1479 = vmatpush.msra.mxu0 %v1450
        %1480 = vmatpush.msra.mxu0 %v1449
        %1481 = vmatmul.f32.gmra.mxu0 %v1447
        %v1482 = vpop.f32.mrf.mxu0
        %v1483 = vadd.f32 0.0, %v1482
        %1484 = vdwg.mxu0
        %v1485 = vld [vmem:[%s15] sm:$0xff]
        %v1486 = vld [vmem:[%s15 + $0x8] sm:$0xff]
        %v1487 = vld [vmem:[%s15 + $0x10] sm:$0xff]
        %v1488 = vld [vmem:[%s15 + $0x18] sm:$0xff]
        %v1489 = vld [vmem:[%s15 + $0x20] sm:$0xff]
        %v1490 = vld [vmem:[%s15 + $0x28] sm:$0xff]
        %v1491 = vld [vmem:[%s15 + $0x30] sm:$0xff]
        %v1492 = vld [vmem:[%s15 + $0x38] sm:$0xff]
        %v1494 = vsel %vm802, %v1483, 0
        %1496 = vmatpush.msra.mxu0 0.0
        %1497 = vmatpush.msra.mxu0 0.0
        %1498 = vmatpush.msra.mxu0 0.0
        %1499 = vmatpush.msra.mxu0 0.0
        %1500 = vmatpush.msra.mxu0 0.0
        %1501 = vmatpush.msra.mxu0 0.0
        %1502 = vmatpush.msra.mxu0 0.0
        %1503 = vmatpush.msra.mxu0 0.0
        %1504 = vmatpush.msra.mxu0 %v1492
        %1505 = vmatpush.msra.mxu0 %v1491
        %1506 = vmatpush.msra.mxu0 %v1490
        %1507 = vmatpush.msra.mxu0 %v1489
        %1508 = vmatpush.msra.mxu0 %v1488
        %1509 = vmatpush.msra.mxu0 %v1487
        %1510 = vmatpush.msra.mxu0 %v1486
        %1511 = vmatpush.msra.mxu0 %v1485
        %1512 = vmatmul.f32.gmra.mxu0 %v1494
        %v1513 = vpop.f32.mrf.mxu0
        %v1514 = vadd.f32 0.0, %v1513
        %1515 = vdwg.mxu0
        %vm1516 = vcmask 35840
        %v1517 = vsel %vm1516, %v1514, 0.0
        %v1518 = vrot.slane %v1517, 4
        %v1519 = vadd.f32 %v1517, %v1518
        %v1520 = vrot.slane %v1519, 2
        %v1521 = vadd.f32 %v1519, %v1520
        %v1522 = vrot.slane %v1521, 1
        %v1523 = vadd.f32 %v1521, %v1522
        %v1524 = vld [vmem:[%s17] sm:$0x1]
        %v1525 = vadd.f32 %v1523, %v1524
        %v1526 = vld [vmem:[%s16] sm:$0xff]
        %v1527 = vld [vmem:[%s16 + $0x8] sm:$0xff]
        %v1528 = vld [vmem:[%s16 + $0x10] sm:$0xff]
        %v1529 = vld [vmem:[%s16 + $0x18] sm:$0xff]
        %v1530 = vld [vmem:[%s16 + $0x20] sm:$0xff]
        %v1531 = vld [vmem:[%s16 + $0x28] sm:$0xff]
        %v1532 = vld [vmem:[%s16 + $0x30] sm:$0xff]
        %v1533 = vld [vmem:[%s16 + $0x38] sm:$0xff]
        %v1535 = vsel %vm802, %v1129, 0
        %1537 = vmatpush.msra.mxu0 0.0
        %1538 = vmatpush.msra.mxu0 0.0
        %1539 = vmatpush.msra.mxu0 0.0
        %1540 = vmatpush.msra.mxu0 0.0
        %1541 = vmatpush.msra.mxu0 0.0
        %1542 = vmatpush.msra.mxu0 0.0
        %1543 = vmatpush.msra.mxu0 0.0
        %1544 = vmatpush.msra.mxu0 0.0
        %1545 = vmatpush.msra.mxu0 %v1533
        %1546 = vmatpush.msra.mxu0 %v1532
        %1547 = vmatpush.msra.mxu0 %v1531
        %1548 = vmatpush.msra.mxu0 %v1530
        %1549 = vmatpush.msra.mxu0 %v1529
        %1550 = vmatpush.msra.mxu0 %v1528
        %1551 = vmatpush.msra.mxu0 %v1527
        %1552 = vmatpush.msra.mxu0 %v1526
        %1553 = vmatmul.f32.gmra.mxu0 %v1535
        %v1554 = vpop.f32.mrf.mxu0
        %v1555 = vadd.f32 0.0, %v1554
        %1556 = vdwg.mxu0
        %vm1557 = vcmask 39936
        %v1558 = vsel %vm1557, %v1555, 0.0
        %v1559 = vrot.slane %v1558, 4
        %v1560 = vadd.f32 %v1558, %v1559
        %v1561 = vrot.slane %v1560, 2
        %v1562 = vadd.f32 %v1560, %v1561
        %v1563 = vrot.slane %v1562, 1
        %v1564 = vadd.f32 %v1562, %v1563
        %v1565 = vld [vmem:[%s18] sm:$0x1]
        %v1566 = vadd.f32 %v1564, %v1565
        %vm1567 = vcmask 32768
        %1568 = vst.msk [vmem:[%s721] sm:$0x1] %vm1567, %v1525
        %1569 = vst.msk [vmem:[%s727] sm:$0x1] %vm1567, %v1566
        %s1570 = sand.u32 %s454, 1
        %s1571 = scalar_lea.sflag [#allocation4], %s1570
        %s1572 = sand.u32 %s454, 1
        %s1573 = scalar_lea.vmem [#allocation13], %s1572
        %s1574 = sand.u32 %s480, 1
        %s1575 = scalar_lea.sflag [#allocation15], %s1574
        %s1576 = sand.u32 %s480, 1
        %s1577 = scalar_lea.vmem [#allocation14], %s1576
        // Predicated region
        $region121: #{tpu_custom_call.1} parent=95 // pred_check
          %p1578 = pneg %p464
        $region122: #{tpu_custom_call.1} parent=95 // pred_check_branch
          %1580 = sbr.rel (%p1578) target = $region124
        $region123: #{tpu_custom_call.1} parent=95 // pred_region
          %1582 = vsyncadd %s1571, 0
          %s1583 = scalar_lea.hbm %s19, %s42
          %s1585 = sshll.u32 %s1573, 4
          %s1586 = int_to_ptr.vmem [resolvable:$true] %s1585
          %s1587 = sshll.u32 %s1583, 4
          %s1588 = int_to_ptr.hbm [resolvable:$true] %s1587
          %1590 = dma.vmem_to_hbm [thread:$0]  %s1586, 16, %s1588, %s1571
        $region124: #{tpu_custom_call.1} parent=95 // pred_fallthru
          _
        // Predicated region
        $region125: #{tpu_custom_call.1} parent=95 // pred_check
          %p1591 = pneg %p490
        $region126: #{tpu_custom_call.1} parent=95 // pred_check_branch
          %1593 = sbr.rel (%p1591) target = $region128
        $region127: #{tpu_custom_call.1} parent=95 // pred_region
          %1595 = vsyncadd %s1575, 0
          %s1596 = scalar_lea.hbm %s20, %s42
          %s1598 = sshll.u32 %s1577, 4
          %s1599 = int_to_ptr.vmem [resolvable:$true] %s1598
          %s1600 = sshll.u32 %s1596, 4
          %s1601 = int_to_ptr.hbm [resolvable:$true] %s1600
          %1603 = dma.vmem_to_hbm [thread:$0]  %s1599, 16, %s1601, %s1575
        $region128: #{tpu_custom_call.1} parent=95 // pred_fallthru
          _
      $region96: #{tpu_custom_call.1} parent=5 // pred_fallthru
        _
      %p1604 = scmp.le.s32.totalorder 2, %s37
      // Predicated region
      $region129: #{tpu_custom_call.1} parent=5 // pred_check
        %p1605 = pneg %p1604
      $region130: #{tpu_custom_call.1} parent=5 // pred_check_branch
        %1607 = sbr.rel (%p1605) target = $region132
      $region131: #{tpu_custom_call.1} parent=5 // pred_region
        %s1608 = ssub.s32 %s37, 2
        // Predicated region
        $region133: #{tpu_custom_call.1} parent=131 // pred_check
          %p1609 = pneg %p470
        $region134: #{tpu_custom_call.1} parent=131 // pred_check_branch
          %1611 = sbr.rel (%p1609) target = $region136
        $region135: #{tpu_custom_call.1} parent=131 // pred_region
          %s1612 = sand.u32 %s455, 1
          %s1613 = scalar_lea.sflag [#allocation4], %s1612
          %s1614 = sand.u32 %s455, 1
          %s1615 = scalar_lea.vmem [#allocation13], %s1614
          %1617 = dma.done %s1613, 16
        $region136: #{tpu_custom_call.1} parent=131 // pred_fallthru
          _
        // Predicated region
        $region137: #{tpu_custom_call.1} parent=131 // pred_check
          %p1618 = pneg %p496
        $region138: #{tpu_custom_call.1} parent=131 // pred_check_branch
          %1620 = sbr.rel (%p1618) target = $region140
        $region139: #{tpu_custom_call.1} parent=131 // pred_region
          %s1621 = sand.u32 %s481, 1
          %s1622 = scalar_lea.sflag [#allocation15], %s1621
          %s1623 = sand.u32 %s481, 1
          %s1624 = scalar_lea.vmem [#allocation14], %s1623
          %1626 = dma.done %s1622, 16
        $region140: #{tpu_custom_call.1} parent=131 // pred_fallthru
          _
      $region132: #{tpu_custom_call.1} parent=5 // pred_fallthru
        _
    $region6: #{tpu_custom_call.1} parent=1 // loop_footer
      %s41 = sadd.s32 1, %s37
    $region7: #{tpu_custom_call.1} parent=1 // loop_footer_branch
      %36 = sbr.rel target = $region3
    $region8: #{tpu_custom_call.1} parent=1 // loop_exit
      _
    %1627 = vsyncpa [#allocation3], 1
    %s1628 = scalar_lea.sflag [#allocation3], 1
    %1629 = vsyncpa %s1628, 1
    %1630 = vsyncpa [#allocation6], 1
    %1631 = vsyncpa [#allocation9], 1
    %1632 = vsyncpa [#allocation12], 1
    %1633 = vsyncpa [#allocation4], 1
    %s1634 = scalar_lea.sflag [#allocation4], 1
    %1635 = vsyncpa %s1634, 1
    %1636 = vsyncpa [#allocation15], 1
    %s1637 = scalar_lea.sflag [#allocation15], 1
    %1638 = vsyncpa %s1637, 1

</llo_original>
